<compile_context>
chip_gen: v6e
topology: v6e:2x2x1
jax: 0.10.0
libtpu: 0.0.40
codegen_flags: <defaults>
</compile_context>

<pallas_src>
import functools

import jax
import jax.numpy as jnp
from jax.experimental import pallas as pl
from jax.experimental.pallas import tpu as pltpu

# ---------------- small synthetic XLM-R-style config ----------------
BATCH = 2
SEQ_IN = 8            # length of input_ids fed to the module
PROMPT_LEN = 4        # soft-prompt length
SEQ = SEQ_IN + PROMPT_LEN
HIDDEN = 32
NUM_HEADS = 2
HEAD_DIM = HIDDEN // NUM_HEADS
INTERMEDIATE = 64
NUM_LAYERS = 2
VOCAB = 128
MAX_POS = 32
PAD_IDX = 1           # RoBERTa pad token id (positions start at PAD_IDX + 1)
LN_EPS = 1e-5


# ---------------- in-kernel helpers ----------------
def _ln(x, g, b, eps=LN_EPS):
    # f32 LayerNorm (rsqrt goes to the EUP slot)
    mu = jnp.mean(x, axis=-1, keepdims=True)
    xc = x - mu
    var = jnp.mean(xc * xc, axis=-1, keepdims=True)
    return xc * jax.lax.rsqrt(var + eps) * g + b


def _mm(a, b):
    # bf16 MXU operands, f32 accumulation
    return jnp.dot(a.astype(jnp.bfloat16), b.astype(jnp.bfloat16),
                   preferred_element_type=jnp.float32)


def _mm_t(a, b):
    # a @ b.T without materializing a transpose (MXU handles the transposed operand)
    return jax.lax.dot_general(a.astype(jnp.bfloat16), b.astype(jnp.bfloat16),
                               (((1,), (1,)), ((), ())),
                               preferred_element_type=jnp.float32)


# ---------------- Pallas kernels ----------------
def _layernorm_kernel(x_ref, g_ref, b_ref, o_ref):
    o_ref[...] = _ln(x_ref[...].astype(jnp.float32),
                     g_ref[...], b_ref[...]).astype(o_ref.dtype)


def pallas_layernorm(x, g, b):
    M, D = x.shape
    return pl.pallas_call(
        _layernorm_kernel,
        out_shape=jax.ShapeDtypeStruct((M, D), x.dtype),
        grid=(1,),
        in_specs=[pl.BlockSpec((M, D), lambda i: (0, 0)),
                  pl.BlockSpec((1, D), lambda i: (0, 0)),
                  pl.BlockSpec((1, D), lambda i: (0, 0))],
        out_specs=pl.BlockSpec((M, D), lambda i: (0, 0)),
    )(x, g, b)


def _encoder_layer_kernel(h_ref, mask_ref, wqkv_ref, bqkv_ref, wo_ref, bo_ref,
                          ln1g_ref, ln1b_ref, w1_ref, b1_ref, w2_ref, b2_ref,
                          ln2g_ref, ln2b_ref, o_ref, *, num_heads, head_dim, scale):
    d_model = num_heads * head_dim
    x = h_ref[0].astype(jnp.float32)          # (S, D)
    mask = mask_ref[0]                         # (1, S) additive mask, f32

    # fused QKV projection: one (S, D) x (D, 3D) matmul
    qkv = _mm(x, wqkv_ref[...]) + bqkv_ref[...]

    # per-head attention (static unroll); outputs re-assembled lane-dense as (S, D)
    ctx_heads = []
    for hd in range(num_heads):
        lo = hd * head_dim
        qh = qkv[:, lo:lo + head_dim]
        kh = qkv[:, d_model + lo:d_model + lo + head_dim]
        vh = qkv[:, 2 * d_model + lo:2 * d_model + lo + head_dim]
        s = _mm_t(qh, kh) * scale + mask                       # (S, S) f32
        s = s - jnp.max(s, axis=-1, keepdims=True)
        p = jnp.exp(s)
        p = p * pl.reciprocal(jnp.sum(p, axis=-1, keepdims=True), approx=True)
        ctx_heads.append(_mm(p, vh))                           # (S, Dh)
    ctx = jnp.concatenate(ctx_heads, axis=-1)                  # (S, D)

    attn_out = _mm(ctx, wo_ref[...]) + bo_ref[...]
    x = _ln(x + attn_out, ln1g_ref[...], ln1b_ref[...])

    inter = _mm(x, w1_ref[...]) + b1_ref[...]
    # TODO(synk): HF XLM-R "gelu" is erf-based; tanh approximation used here.
    inter = jax.nn.gelu(inter, approximate=True)
    ffn_out = _mm(inter, w2_ref[...]) + b2_ref[...]
    x = _ln(x + ffn_out, ln2g_ref[...], ln2b_ref[...])

    o_ref[0] = x.astype(o_ref.dtype)


def pallas_encoder_layer(h, add_mask, lp, scale):
    B, S, D = h.shape
    I = lp["w1"].shape[1]
    kernel = functools.partial(_encoder_layer_kernel, num_heads=NUM_HEADS,
                               head_dim=HEAD_DIM, scale=scale)
    rep = lambda b: (0, 0)   # replicated (weights / biases) blocks
    return pl.pallas_call(
        kernel,
        out_shape=jax.ShapeDtypeStruct((B, S, D), h.dtype),
        grid=(B,),
        in_specs=[
            pl.BlockSpec((1, S, D), lambda b: (b, 0, 0)),    # h
            pl.BlockSpec((1, 1, S), lambda b: (b, 0, 0)),    # additive mask
            pl.BlockSpec((D, 3 * D), rep),                   # wqkv (fused q/k/v)
            pl.BlockSpec((1, 3 * D), rep),                   # bqkv
            pl.BlockSpec((D, D), rep),                       # wo
            pl.BlockSpec((1, D), rep),                       # bo
            pl.BlockSpec((1, D), rep),                       # ln1_g
            pl.BlockSpec((1, D), rep),                       # ln1_b
            pl.BlockSpec((D, I), rep),                       # w1
            pl.BlockSpec((1, I), rep),                       # b1
            pl.BlockSpec((I, D), rep),                       # w2
            pl.BlockSpec((1, D), rep),                       # b2
            pl.BlockSpec((1, D), rep),                       # ln2_g
            pl.BlockSpec((1, D), rep),                       # ln2_b
        ],
        out_specs=pl.BlockSpec((1, S, D), lambda b: (b, 0, 0)),
        compiler_params=pltpu.CompilerParams(dimension_semantics=("parallel",)),
    )(h, add_mask, lp["wqkv"], lp["bqkv"], lp["wo"], lp["bo"],
      lp["ln1_g"], lp["ln1_b"], lp["w1"], lp["b1"], lp["w2"], lp["b2"],
      lp["ln2_g"], lp["ln2_b"])


def _lm_head_loss_kernel(x_ref, wd_ref, bd_ref, lng_ref, lnb_ref, emb_ref, db_ref,
                         labels_ref, logits_ref, loss_ref):
    x = x_ref[...].astype(jnp.float32)                         # (M, D)
    y = _mm(x, wd_ref[...]) + bd_ref[...]
    # TODO(synk): HF lm_head gelu is erf-based; tanh approximation used here.
    y = jax.nn.gelu(y, approximate=True)
    y = _ln(y, lng_ref[...], lnb_ref[...])
    # tied decoder: contract hidden against the UNtransposed embedding matrix (trans_b)
    logits = _mm_t(y, emb_ref[...]) + db_ref[...]              # (M, V) f32
    logits_ref[...] = logits.astype(logits_ref.dtype)

    # masked-LM loss == torch CrossEntropyLoss(ignore_index=-100, reduction="mean")
    labels = labels_ref[...]                                   # (M, 1) int32
    m = jnp.max(logits, axis=-1, keepdims=True)
    lse = jnp.log(jnp.sum(jnp.exp(logits - m), axis=-1, keepdims=True)) + m
    col = jax.lax.broadcasted_iota(jnp.int32, logits.shape, 1)
    picked = jnp.sum(jnp.where(col == labels, logits, 0.0), axis=-1, keepdims=True)
    valid = (labels != -100).astype(jnp.float32)
    num = jnp.sum(valid * (lse - picked))
    den = jnp.sum(valid)
    loss_ref[0, 0] = num / jnp.maximum(den, 1.0)


def pallas_lm_head_loss(x, params, labels2):
    M, D = x.shape
    V = params["word_emb"].shape[0]
    rep = lambda i: (0, 0)
    logits, loss = pl.pallas_call(
        _lm_head_loss_kernel,
        out_shape=(jax.ShapeDtypeStruct((M, V), jnp.float32),
                   jax.ShapeDtypeStruct((1, 1), jnp.float32)),
        grid=(1,),
        in_specs=[
            pl.BlockSpec((M, D), rep),      # x
            pl.BlockSpec((D, D), rep),      # lm_dense_w
            pl.BlockSpec((1, D), rep),      # lm_dense_b
            pl.BlockSpec((1, D), rep),      # lm_ln_g
            pl.BlockSpec((1, D), rep),      # lm_ln_b
            pl.BlockSpec((V, D), rep),      # word_emb (untransposed, tied decoder)
            pl.BlockSpec((1, V), rep),      # decoder bias
            pl.BlockSpec((M, 1), rep),      # labels
        ],
        out_specs=(pl.BlockSpec((M, V), rep),
                   pl.BlockSpec(memory_space=pltpu.MemorySpace.SMEM)),
    )(x, params["lm_dense_w"], params["lm_dense_b"], params["lm_ln_g"],
      params["lm_ln_b"], params["word_emb"], params["lm_decoder_b"], labels2)
    return loss[0, 0], logits


# ---------------- deterministic parameter init (synthetic weights) ----------------
def init_params(key):
    std = 0.02
    ks = iter(jax.random.split(key, 8 + NUM_LAYERS * 8))

    def nrm(shape):
        return std * jax.random.normal(next(ks), shape, jnp.float32)

    params = {
        "word_emb": nrm((VOCAB, HIDDEN)),
        "pos_emb": nrm((MAX_POS, HIDDEN)),
        "type_emb": nrm((1, HIDDEN)),
        "emb_ln_g": jnp.ones((1, HIDDEN), jnp.float32),
        "emb_ln_b": jnp.zeros((1, HIDDEN), jnp.float32),
        "layers": [],
        "lm_dense_w": nrm((HIDDEN, HIDDEN)),
        "lm_dense_b": jnp.zeros((1, HIDDEN), jnp.float32),
        "lm_ln_g": jnp.ones((1, HIDDEN), jnp.float32),
        "lm_ln_b": jnp.zeros((1, HIDDEN), jnp.float32),
        "lm_decoder_b": jnp.zeros((1, VOCAB), jnp.float32),
    }
    for _ in range(NUM_LAYERS):
        # wq/wk/wv are stored pre-concatenated as a single (D, 3D) weight so the
        # fused layer kernel issues one QKV matmul.
        params["layers"].append({
            "wqkv": nrm((HIDDEN, 3 * HIDDEN)),
            "bqkv": jnp.zeros((1, 3 * HIDDEN), jnp.float32),
            "wo": nrm((HIDDEN, HIDDEN)), "bo": jnp.zeros((1, HIDDEN), jnp.float32),
            "ln1_g": jnp.ones((1, HIDDEN), jnp.float32),
            "ln1_b": jnp.zeros((1, HIDDEN), jnp.float32),
            "w1": nrm((HIDDEN, INTERMEDIATE)),
            "b1": jnp.zeros((1, INTERMEDIATE), jnp.float32),
            "w2": nrm((INTERMEDIATE, HIDDEN)),
            "b2": jnp.zeros((1, HIDDEN), jnp.float32),
            "ln2_g": jnp.ones((1, HIDDEN), jnp.float32),
            "ln2_b": jnp.zeros((1, HIDDEN), jnp.float32),
        })
    # PromptXLMR._init_soft_prompt: copy rows sampled from the word-embedding matrix
    prompt_rows = jax.random.choice(next(ks), VOCAB, (PROMPT_LEN,), replace=False)
    params["soft_prompt"] = params["word_emb"][prompt_rows]
    return params


# ---------------- forward pass (PromptXLMR.forward, eval / no-mixup path) ----------------
def prompt_xlmr_forward(params, input_ids, attention_mask, labels):
    B = input_ids.shape[0]
    D, S = HIDDEN, SEQ

    # --- _concat_soft_prompt_to_inputs: [CLS] + soft_prompt + rest-of-tokens ---
    input_embeds = jnp.take(params["word_emb"], input_ids, axis=0)       # (B, S_in, D)
    sp = jnp.broadcast_to(params["soft_prompt"][None], (B, PROMPT_LEN, D))
    inputs_embeds = jnp.concatenate([input_embeds[:, :1], sp, input_embeds[:, 1:]], axis=1)

    # --- _extend_accordingly: prompt attention=1, prompt labels=-100 ---
    attention_mask = jnp.concatenate(
        [jnp.ones((B, PROMPT_LEN), attention_mask.dtype), attention_mask], axis=1)
    labels = jnp.concatenate(
        [jnp.full((B, PROMPT_LEN), -100, labels.dtype), labels], axis=1)

    # --- roberta embeddings: inputs_embeds path -> position ids are
    #     arange(PAD_IDX+1, S+PAD_IDX+1) (create_position_ids_from_inputs_embeds) ---
    pos_ids = jnp.arange(S) + PAD_IDX + 1
    h = inputs_embeds + params["pos_emb"][pos_ids][None] + params["type_emb"][0][None, None]
    h = pallas_layernorm(h.reshape(B * S, D), params["emb_ln_g"], params["emb_ln_b"])
    h = h.reshape(B, S, D)

    # additive attention mask kept f32 for the softmax path
    add_mask = ((1.0 - attention_mask.astype(jnp.float32)) * -1e9)[:, None, :]   # (B,1,S)
    scale = 1.0 / float(HEAD_DIM) ** 0.5

    # --- roberta encoder: one fused pallas_call per layer (batch axis -> parallel grid) ---
    for lp in params["layers"]:
        h = pallas_encoder_layer(h, add_mask, lp, scale)

    # --- lm_head (dense+gelu+LN+tied decoder) fused with the masked-LM loss ---
    loss, logits = pallas_lm_head_loss(
        h.reshape(B * S, D), params, labels.reshape(B * S, 1).astype(jnp.int32))
    prediction_scores = logits.reshape(B, S, VOCAB)
    # TODO(synk): prompt_helper seqcls conversion / mixup / multilingual loss paths are
    # external or training-only; return the return_dict=False output (loss, scores).
    return loss, prediction_scores


if __name__ == "__main__":
    key = jax.random.PRNGKey(0)
    pkey, ikey = jax.random.split(key)
    params = init_params(pkey)

    input_ids = jax.random.randint(ikey, (BATCH, SEQ_IN), 0, VOCAB, dtype=jnp.int32)
    attention_mask = jnp.ones((BATCH, SEQ_IN), dtype=jnp.int32)
    labels = jnp.full((BATCH, SEQ_IN), -100, dtype=jnp.int32)
    labels = labels.at[0, 3].set(7).at[1, 5].set(42)   # one <mask>-labelled position each

    loss, scores = jax.jit(prompt_xlmr_forward)(params, input_ids, attention_mask, labels)
    jax.block_until_ready((loss, scores))
    assert scores.shape == (BATCH, SEQ, VOCAB)
    assert bool(jnp.isfinite(loss))
    print("KERNEL_OK")
</pallas_src>

<mosaic_0001>
module attributes {stable_mosaic.version = 11 : i64} {
  func.func @_layernorm_kernel(%arg0: i32, %arg1: memref<24x32xf32, #tpu.memory_space<vmem>>, %arg2: memref<1x32xf32, #tpu.memory_space<vmem>>, %arg3: memref<1x32xf32, #tpu.memory_space<vmem>>, %arg4: memref<24x32xf32, #tpu.memory_space<vmem>>) attributes {dimension_semantics = [#tpu.dimension_semantics<arbitrary>], iteration_bounds = array<i64: 1>, scalar_prefetch = 0 : i64, scratch_operands = 0 : i64, tpu.core_type = #tpu.core_type<tc>, window_params = [{pipeline_mode = #tpu.pipeline_mode<synchronous>, transform_indices = @transform_0, window_bounds = array<i64: 24, 32>}, {pipeline_mode = #tpu.pipeline_mode<synchronous>, transform_indices = @transform_1, window_bounds = array<i64: 1, 32>}, {pipeline_mode = #tpu.pipeline_mode<synchronous>, transform_indices = @transform_2, window_bounds = array<i64: 1, 32>}, {pipeline_mode = #tpu.pipeline_mode<synchronous>, transform_indices = @transform_3, window_bounds = array<i64: 24, 32>}]} {
    %c0 = arith.constant 0 : index
    %c0_0 = arith.constant 0 : index
    %0 = vector.load %arg1[%c0, %c0_0] : memref<24x32xf32, #tpu.memory_space<vmem>>, vector<24x32xf32>
    %c0_1 = arith.constant 0 : index
    %c0_2 = arith.constant 0 : index
    %1 = vector.load %arg2[%c0_1, %c0_2] : memref<1x32xf32, #tpu.memory_space<vmem>>, vector<1x32xf32>
    %c0_3 = arith.constant 0 : index
    %c0_4 = arith.constant 0 : index
    %2 = vector.load %arg3[%c0_3, %c0_4] : memref<1x32xf32, #tpu.memory_space<vmem>>, vector<1x32xf32>
    %cst = arith.constant dense<0.000000e+00> : vector<24xf32>
    %3 = vector.multi_reduction <add>, %0, %cst [1] : vector<24x32xf32> to vector<24xf32>
    %4 = vector.shape_cast %3 : vector<24xf32> to vector<24x1xf32>
    %cst_5 = arith.constant 3.200000e+01 : f32
    %5 = vector.broadcast %cst_5 : f32 to vector<24x1xf32>
    %6 = arith.divf %4, %5 : vector<24x1xf32>
    %7 = vector.broadcast %6 : vector<24x1xf32> to vector<24x32xf32>
    %8 = arith.subf %0, %7 : vector<24x32xf32>
    %9 = arith.mulf %8, %8 : vector<24x32xf32>
    %cst_6 = arith.constant dense<0.000000e+00> : vector<24xf32>
    %10 = vector.multi_reduction <add>, %9, %cst_6 [1] : vector<24x32xf32> to vector<24xf32>
    %11 = vector.shape_cast %10 : vector<24xf32> to vector<24x1xf32>
    %cst_7 = arith.constant 3.200000e+01 : f32
    %12 = vector.broadcast %cst_7 : f32 to vector<24x1xf32>
    %13 = arith.divf %11, %12 : vector<24x1xf32>
    %cst_8 = arith.constant 9.99999974E-6 : f32
    %14 = vector.broadcast %cst_8 : f32 to vector<24x1xf32>
    %15 = arith.addf %13, %14 : vector<24x1xf32>
    %16 = math.rsqrt %15 : vector<24x1xf32>
    %17 = vector.broadcast %16 : vector<24x1xf32> to vector<24x32xf32>
    %18 = arith.mulf %8, %17 : vector<24x32xf32>
    %19 = vector.broadcast %1 : vector<1x32xf32> to vector<24x32xf32>
    %20 = arith.mulf %18, %19 : vector<24x32xf32>
    %21 = vector.broadcast %2 : vector<1x32xf32> to vector<24x32xf32>
    %22 = arith.addf %20, %21 : vector<24x32xf32>
    %c0_9 = arith.constant 0 : index
    %c0_10 = arith.constant 0 : index
    %23 = vector.load %arg4[%c0_9, %c0_10] : memref<24x32xf32, #tpu.memory_space<vmem>>, vector<24x32xf32>
    tpu.vector_store %arg4[%c0_9, %c0_10], %22 {strides = array<i32>} : memref<24x32xf32, #tpu.memory_space<vmem>>, vector<24x32xf32>,
    return
  }
  func.func @transform_0(%arg0: i32) -> (i32, i32) {
    %c0_i32 = arith.constant 0 : i32
    %c0_i32_0 = arith.constant 0 : i32
    %c0_i32_1 = arith.constant 0 : i32
    return %c0_i32, %c0_i32_0 : i32, i32
  }
  func.func @transform_1(%arg0: i32) -> (i32, i32) {
    %c0_i32 = arith.constant 0 : i32
    %c0_i32_0 = arith.constant 0 : i32
    %c0_i32_1 = arith.constant 0 : i32
    return %c0_i32, %c0_i32_0 : i32, i32
  }
  func.func @transform_2(%arg0: i32) -> (i32, i32) {
    %c0_i32 = arith.constant 0 : i32
    %c0_i32_0 = arith.constant 0 : i32
    %c0_i32_1 = arith.constant 0 : i32
    return %c0_i32, %c0_i32_0 : i32, i32
  }
  func.func @transform_3(%arg0: i32) -> (i32, i32) {
    %c0_i32 = arith.constant 0 : i32
    %c0_i32_0 = arith.constant 0 : i32
    %c0_i32_1 = arith.constant 0 : i32
    return %c0_i32, %c0_i32_0 : i32, i32
  }
}

module attributes {stable_mosaic.version = 11 : i64} {
  func.func @_encoder_layer_kernel(%arg0: i32, %arg1: memref<1x12x32xf32, #tpu.memory_space<vmem>>, %arg2: memref<1x1x12xf32, #tpu.memory_space<vmem>>, %arg3: memref<32x96xf32, #tpu.memory_space<vmem>>, %arg4: memref<1x96xf32, #tpu.memory_space<vmem>>, %arg5: memref<32x32xf32, #tpu.memory_space<vmem>>, %arg6: memref<1x32xf32, #tpu.memory_space<vmem>>, %arg7: memref<1x32xf32, #tpu.memory_space<vmem>>, %arg8: memref<1x32xf32, #tpu.memory_space<vmem>>, %arg9: memref<32x64xf32, #tpu.memory_space<vmem>>, %arg10: memref<1x64xf32, #tpu.memory_space<vmem>>, %arg11: memref<64x32xf32, #tpu.memory_space<vmem>>, %arg12: memref<1x32xf32, #tpu.memory_space<vmem>>, %arg13: memref<1x32xf32, #tpu.memory_space<vmem>>, %arg14: memref<1x32xf32, #tpu.memory_space<vmem>>, %arg15: memref<1x12x32xf32, #tpu.memory_space<vmem>>) attributes {dimension_semantics = [#tpu.dimension_semantics<parallel>], iteration_bounds = array<i64: 2>, scalar_prefetch = 0 : i64, scratch_operands = 0 : i64, tpu.core_type = #tpu.core_type<tc>, window_params = [{transform_indices = @transform_0, window_bounds = array<i64: 1, 12, 32>}, {transform_indices = @transform_1, window_bounds = array<i64: 1, 1, 12>}, {pipeline_mode = #tpu.pipeline_mode<synchronous>, transform_indices = @transform_2, window_bounds = array<i64: 32, 96>}, {pipeline_mode = #tpu.pipeline_mode<synchronous>, transform_indices = @transform_3, window_bounds = array<i64: 1, 96>}, {pipeline_mode = #tpu.pipeline_mode<synchronous>, transform_indices = @transform_4, window_bounds = array<i64: 32, 32>}, {pipeline_mode = #tpu.pipeline_mode<synchronous>, transform_indices = @transform_5, window_bounds = array<i64: 1, 32>}, {pipeline_mode = #tpu.pipeline_mode<synchronous>, transform_indices = @transform_6, window_bounds = array<i64: 1, 32>}, {pipeline_mode = #tpu.pipeline_mode<synchronous>, transform_indices = @transform_7, window_bounds = array<i64: 1, 32>}, {pipeline_mode = #tpu.pipeline_mode<synchronous>, transform_indices = @transform_8, window_bounds = array<i64: 32, 64>}, {pipeline_mode = #tpu.pipeline_mode<synchronous>, transform_indices = @transform_9, window_bounds = array<i64: 1, 64>}, {pipeline_mode = #tpu.pipeline_mode<synchronous>, transform_indices = @transform_10, window_bounds = array<i64: 64, 32>}, {pipeline_mode = #tpu.pipeline_mode<synchronous>, transform_indices = @transform_11, window_bounds = array<i64: 1, 32>}, {pipeline_mode = #tpu.pipeline_mode<synchronous>, transform_indices = @transform_12, window_bounds = array<i64: 1, 32>}, {pipeline_mode = #tpu.pipeline_mode<synchronous>, transform_indices = @transform_13, window_bounds = array<i64: 1, 32>}, {transform_indices = @transform_14, window_bounds = array<i64: 1, 12, 32>}]} {
    %c0 = arith.constant 0 : index
    %c0_0 = arith.constant 0 : index
    %c0_1 = arith.constant 0 : index
    %0 = vector.load %arg1[%c0, %c0_0, %c0_1] : memref<1x12x32xf32, #tpu.memory_space<vmem>>, vector<1x12x32xf32>
    %1 = vector.shape_cast %0 : vector<1x12x32xf32> to vector<12x32xf32>
    %c0_2 = arith.constant 0 : index
    %c0_3 = arith.constant 0 : index
    %c0_4 = arith.constant 0 : index
    %2 = vector.load %arg2[%c0_2, %c0_3, %c0_4] : memref<1x1x12xf32, #tpu.memory_space<vmem>>, vector<1x1x12xf32>
    %3 = vector.shape_cast %2 : vector<1x1x12xf32> to vector<1x12xf32>
    %c0_5 = arith.constant 0 : index
    %c0_6 = arith.constant 0 : index
    %4 = vector.load %arg3[%c0_5, %c0_6] : memref<32x96xf32, #tpu.memory_space<vmem>>, vector<32x96xf32>
    %5 = arith.truncf %1 : vector<12x32xf32> to vector<12x32xbf16>
    %6 = arith.truncf %4 : vector<32x96xf32> to vector<32x96xbf16>
    %cst = arith.constant dense<0.000000e+00> : vector<12x96xf32>
    %7 = tpu.matmul %5, %6, %cst {dimension_numbers = #tpu.dot_dimension_numbers<[1], [0], [0], [1], [0, 0, 1, 1], [], []>} : vector<12x32xbf16>, vector<32x96xbf16>, vector<12x96xf32> -> vector<12x96xf32>
    %c0_7 = arith.constant 0 : index
    %c0_8 = arith.constant 0 : index
    %8 = vector.load %arg4[%c0_7, %c0_8] : memref<1x96xf32, #tpu.memory_space<vmem>>, vector<1x96xf32>
    %9 = vector.broadcast %8 : vector<1x96xf32> to vector<12x96xf32>
    %10 = arith.addf %7, %9 : vector<12x96xf32>
    %11 = vector.extract_strided_slice %10 {offsets = [0, 0], sizes = [12, 16], strides = [1, 1]} : vector<12x96xf32> to vector<12x16xf32>
    %12 = vector.extract_strided_slice %10 {offsets = [0, 32], sizes = [12, 16], strides = [1, 1]} : vector<12x96xf32> to vector<12x16xf32>
    %13 = vector.extract_strided_slice %10 {offsets = [0, 64], sizes = [12, 16], strides = [1, 1]} : vector<12x96xf32> to vector<12x16xf32>
    %14 = arith.truncf %11 : vector<12x16xf32> to vector<12x16xbf16>
    %15 = arith.truncf %12 : vector<12x16xf32> to vector<12x16xbf16>
    %cst_9 = arith.constant dense<0.000000e+00> : vector<12x12xf32>
    %16 = tpu.matmul %14, %15, %cst_9 {dimension_numbers = #tpu.dot_dimension_numbers<[1], [1], [0], [0], [0, 0, 1, 0], [], []>} : vector<12x16xbf16>, vector<12x16xbf16>, vector<12x12xf32> -> vector<12x12xf32>
    %cst_10 = arith.constant 2.500000e-01 : f32
    %17 = vector.broadcast %cst_10 : f32 to vector<12x12xf32>
    %18 = arith.mulf %16, %17 : vector<12x12xf32>
    %19 = vector.broadcast %3 : vector<1x12xf32> to vector<12x12xf32>
    %20 = arith.addf %18, %19 : vector<12x12xf32>
    %cst_11 = arith.constant dense<0xFF800000> : vector<12xf32>
    %21 = vector.multi_reduction <maximumf>, %20, %cst_11 [1] : vector<12x12xf32> to vector<12xf32>
    %22 = vector.shape_cast %21 : vector<12xf32> to vector<12x1xf32>
    %23 = vector.broadcast %22 : vector<12x1xf32> to vector<12x12xf32>
    %24 = arith.subf %20, %23 : vector<12x12xf32>
    %25 = math.exp %24 : vector<12x12xf32>
    %cst_12 = arith.constant dense<0.000000e+00> : vector<12xf32>
    %26 = vector.multi_reduction <add>, %25, %cst_12 [1] : vector<12x12xf32> to vector<12xf32>
    %27 = vector.shape_cast %26 : vector<12xf32> to vector<12x1xf32>
    %28 = tpu.reciprocal %27 {approx = true} : vector<12x1xf32> -> vector<12x1xf32>
    %29 = vector.broadcast %28 : vector<12x1xf32> to vector<12x12xf32>
    %30 = arith.mulf %25, %29 : vector<12x12xf32>
    %31 = arith.truncf %30 : vector<12x12xf32> to vector<12x12xbf16>
    %32 = arith.truncf %13 : vector<12x16xf32> to vector<12x16xbf16>
    %cst_13 = arith.constant dense<0.000000e+00> : vector<12x16xf32>
    %33 = tpu.matmul %31, %32, %cst_13 {dimension_numbers = #tpu.dot_dimension_numbers<[1], [0], [0], [1], [0, 0, 1, 1], [], []>} : vector<12x12xbf16>, vector<12x16xbf16>, vector<12x16xf32> -> vector<12x16xf32>
    %34 = vector.extract_strided_slice %10 {offsets = [0, 16], sizes = [12, 16], strides = [1, 1]} : vector<12x96xf32> to vector<12x16xf32>
    %35 = vector.extract_strided_slice %10 {offsets = [0, 48], sizes = [12, 16], strides = [1, 1]} : vector<12x96xf32> to vector<12x16xf32>
    %36 = vector.extract_strided_slice %10 {offsets = [0, 80], sizes = [12, 16], strides = [1, 1]} : vector<12x96xf32> to vector<12x16xf32>
    %37 = arith.truncf %34 : vector<12x16xf32> to vector<12x16xbf16>
    %38 = arith.truncf %35 : vector<12x16xf32> to vector<12x16xbf16>
    %cst_14 = arith.constant dense<0.000000e+00> : vector<12x12xf32>
    %39 = tpu.matmul %37, %38, %cst_14 {dimension_numbers = #tpu.dot_dimension_numbers<[1], [1], [0], [0], [0, 0, 1, 0], [], []>} : vector<12x16xbf16>, vector<12x16xbf16>, vector<12x12xf32> -> vector<12x12xf32>
    %cst_15 = arith.constant 2.500000e-01 : f32
    %40 = vector.broadcast %cst_15 : f32 to vector<12x12xf32>
    %41 = arith.mulf %39, %40 : vector<12x12xf32>
    %42 = vector.broadcast %3 : vector<1x12xf32> to vector<12x12xf32>
    %43 = arith.addf %41, %42 : vector<12x12xf32>
    %cst_16 = arith.constant dense<0xFF800000> : vector<12xf32>
    %44 = vector.multi_reduction <maximumf>, %43, %cst_16 [1] : vector<12x12xf32> to vector<12xf32>
    %45 = vector.shape_cast %44 : vector<12xf32> to vector<12x1xf32>
    %46 = vector.broadcast %45 : vector<12x1xf32> to vector<12x12xf32>
    %47 = arith.subf %43, %46 : vector<12x12xf32>
    %48 = math.exp %47 : vector<12x12xf32>
    %cst_17 = arith.constant dense<0.000000e+00> : vector<12xf32>
    %49 = vector.multi_reduction <add>, %48, %cst_17 [1] : vector<12x12xf32> to vector<12xf32>
    %50 = vector.shape_cast %49 : vector<12xf32> to vector<12x1xf32>
    %51 = tpu.reciprocal %50 {approx = true} : vector<12x1xf32> -> vector<12x1xf32>
    %52 = vector.broadcast %51 : vector<12x1xf32> to vector<12x12xf32>
    %53 = arith.mulf %48, %52 : vector<12x12xf32>
    %54 = arith.truncf %53 : vector<12x12xf32> to vector<12x12xbf16>
    %55 = arith.truncf %36 : vector<12x16xf32> to vector<12x16xbf16>
    %cst_18 = arith.constant dense<0.000000e+00> : vector<12x16xf32>
    %56 = tpu.matmul %54, %55, %cst_18 {dimension_numbers = #tpu.dot_dimension_numbers<[1], [0], [0], [1], [0, 0, 1, 1], [], []>} : vector<12x12xbf16>, vector<12x16xbf16>, vector<12x16xf32> -> vector<12x16xf32>
    %57 = tpu.concatenate %33, %56 in 1 : vector<12x16xf32>, vector<12x16xf32> -> vector<12x32xf32>
    %c0_19 = arith.constant 0 : index
    %c0_20 = arith.constant 0 : index
    %58 = vector.load %arg5[%c0_19, %c0_20] : memref<32x32xf32, #tpu.memory_space<vmem>>, vector<32x32xf32>
    %59 = arith.truncf %57 : vector<12x32xf32> to vector<12x32xbf16>
    %60 = arith.truncf %58 : vector<32x32xf32> to vector<32x32xbf16>
    %cst_21 = arith.constant dense<0.000000e+00> : vector<12x32xf32>
    %61 = tpu.matmul %59, %60, %cst_21 {dimension_numbers = #tpu.dot_dimension_numbers<[1], [0], [0], [1], [0, 0, 1, 1], [], []>} : vector<12x32xbf16>, vector<32x32xbf16>, vector<12x32xf32> -> vector<12x32xf32>
    %c0_22 = arith.constant 0 : index
    %c0_23 = arith.constant 0 : index
    %62 = vector.load %arg6[%c0_22, %c0_23] : memref<1x32xf32, #tpu.memory_space<vmem>>, vector<1x32xf32>
    %63 = vector.broadcast %62 : vector<1x32xf32> to vector<12x32xf32>
    %64 = arith.addf %61, %63 : vector<12x32xf32>
    %65 = arith.addf %1, %64 : vector<12x32xf32>
    %c0_24 = arith.constant 0 : index
    %c0_25 = arith.constant 0 : index
    %66 = vector.load %arg7[%c0_24, %c0_25] : memref<1x32xf32, #tpu.memory_space<vmem>>, vector<1x32xf32>
    %c0_26 = arith.constant 0 : index
    %c0_27 = arith.constant 0 : index
    %67 = vector.load %arg8[%c0_26, %c0_27] : memref<1x32xf32, #tpu.memory_space<vmem>>, vector<1x32xf32>
    %cst_28 = arith.constant dense<0.000000e+00> : vector<12xf32>
    %68 = vector.multi_reduction <add>, %65, %cst_28 [1] : vector<12x32xf32> to vector<12xf32>
    %69 = vector.shape_cast %68 : vector<12xf32> to vector<12x1xf32>
    %cst_29 = arith.constant 3.200000e+01 : f32
    %70 = vector.broadcast %cst_29 : f32 to vector<12x1xf32>
    %71 = arith.divf %69, %70 : vector<12x1xf32>
    %72 = vector.broadcast %71 : vector<12x1xf32> to vector<12x32xf32>
    %73 = arith.subf %65, %72 : vector<12x32xf32>
    %74 = arith.mulf %73, %73 : vector<12x32xf32>
    %cst_30 = arith.constant dense<0.000000e+00> : vector<12xf32>
    %75 = vector.multi_reduction <add>, %74, %cst_30 [1] : vector<12x32xf32> to vector<12xf32>
    %76 = vector.shape_cast %75 : vector<12xf32> to vector<12x1xf32>
    %cst_31 = arith.constant 3.200000e+01 : f32
    %77 = vector.broadcast %cst_31 : f32 to vector<12x1xf32>
    %78 = arith.divf %76, %77 : vector<12x1xf32>
    %cst_32 = arith.constant 9.99999974E-6 : f32
    %79 = vector.broadcast %cst_32 : f32 to vector<12x1xf32>
    %80 = arith.addf %78, %79 : vector<12x1xf32>
    %81 = math.rsqrt %80 : vector<12x1xf32>
    %82 = vector.broadcast %81 : vector<12x1xf32> to vector<12x32xf32>
    %83 = arith.mulf %73, %82 : vector<12x32xf32>
    %84 = vector.broadcast %66 : vector<1x32xf32> to vector<12x32xf32>
    %85 = arith.mulf %83, %84 : vector<12x32xf32>
    %86 = vector.broadcast %67 : vector<1x32xf32> to vector<12x32xf32>
    %87 = arith.addf %85, %86 : vector<12x32xf32>
    %c0_33 = arith.constant 0 : index
    %c0_34 = arith.constant 0 : index
    %88 = vector.load %arg9[%c0_33, %c0_34] : memref<32x64xf32, #tpu.memory_space<vmem>>, vector<32x64xf32>
    %89 = arith.truncf %87 : vector<12x32xf32> to vector<12x32xbf16>
    %90 = arith.truncf %88 : vector<32x64xf32> to vector<32x64xbf16>
    %cst_35 = arith.constant dense<0.000000e+00> : vector<12x64xf32>
    %91 = tpu.matmul %89, %90, %cst_35 {dimension_numbers = #tpu.dot_dimension_numbers<[1], [0], [0], [1], [0, 0, 1, 1], [], []>} : vector<12x32xbf16>, vector<32x64xbf16>, vector<12x64xf32> -> vector<12x64xf32>
    %c0_36 = arith.constant 0 : index
    %c0_37 = arith.constant 0 : index
    %92 = vector.load %arg10[%c0_36, %c0_37] : memref<1x64xf32, #tpu.memory_space<vmem>>, vector<1x64xf32>
    %93 = vector.broadcast %92 : vector<1x64xf32> to vector<12x64xf32>
    %94 = arith.addf %91, %93 : vector<12x64xf32>
    %95 = arith.mulf %94, %94 : vector<12x64xf32>
    %96 = arith.mulf %94, %95 : vector<12x64xf32>
    %cst_38 = arith.constant 4.471500e-02 : f32
    %97 = vector.broadcast %cst_38 : f32 to vector<12x64xf32>
    %98 = arith.mulf %97, %96 : vector<12x64xf32>
    %99 = arith.addf %94, %98 : vector<12x64xf32>
    %cst_39 = arith.constant 0.797884583 : f32
    %100 = vector.broadcast %cst_39 : f32 to vector<12x64xf32>
    %101 = arith.mulf %100, %99 : vector<12x64xf32>
    %102 = math.tanh %101 : vector<12x64xf32>
    %cst_40 = arith.constant 1.000000e+00 : f32
    %103 = vector.broadcast %cst_40 : f32 to vector<12x64xf32>
    %104 = arith.addf %103, %102 : vector<12x64xf32>
    %cst_41 = arith.constant 5.000000e-01 : f32
    %105 = vector.broadcast %cst_41 : f32 to vector<12x64xf32>
    %106 = arith.mulf %105, %104 : vector<12x64xf32>
    %107 = arith.mulf %94, %106 : vector<12x64xf32>
    %c0_42 = arith.constant 0 : index
    %c0_43 = arith.constant 0 : index
    %108 = vector.load %arg11[%c0_42, %c0_43] : memref<64x32xf32, #tpu.memory_space<vmem>>, vector<64x32xf32>
    %109 = arith.truncf %107 : vector<12x64xf32> to vector<12x64xbf16>
    %110 = arith.truncf %108 : vector<64x32xf32> to vector<64x32xbf16>
    %cst_44 = arith.constant dense<0.000000e+00> : vector<12x32xf32>
    %111 = tpu.matmul %109, %110, %cst_44 {dimension_numbers = #tpu.dot_dimension_numbers<[1], [0], [0], [1], [0, 0, 1, 1], [], []>} : vector<12x64xbf16>, vector<64x32xbf16>, vector<12x32xf32> -> vector<12x32xf32>
    %c0_45 = arith.constant 0 : index
    %c0_46 = arith.constant 0 : index
    %112 = vector.load %arg12[%c0_45, %c0_46] : memref<1x32xf32, #tpu.memory_space<vmem>>, vector<1x32xf32>
    %113 = vector.broadcast %112 : vector<1x32xf32> to vector<12x32xf32>
    %114 = arith.addf %111, %113 : vector<12x32xf32>
    %115 = arith.addf %87, %114 : vector<12x32xf32>
    %c0_47 = arith.constant 0 : index
    %c0_48 = arith.constant 0 : index
    %116 = vector.load %arg13[%c0_47, %c0_48] : memref<1x32xf32, #tpu.memory_space<vmem>>, vector<1x32xf32>
    %c0_49 = arith.constant 0 : index
    %c0_50 = arith.constant 0 : index
    %117 = vector.load %arg14[%c0_49, %c0_50] : memref<1x32xf32, #tpu.memory_space<vmem>>, vector<1x32xf32>
    %cst_51 = arith.constant dense<0.000000e+00> : vector<12xf32>
    %118 = vector.multi_reduction <add>, %115, %cst_51 [1] : vector<12x32xf32> to vector<12xf32>
    %119 = vector.shape_cast %118 : vector<12xf32> to vector<12x1xf32>
    %cst_52 = arith.constant 3.200000e+01 : f32
    %120 = vector.broadcast %cst_52 : f32 to vector<12x1xf32>
    %121 = arith.divf %119, %120 : vector<12x1xf32>
    %122 = vector.broadcast %121 : vector<12x1xf32> to vector<12x32xf32>
    %123 = arith.subf %115, %122 : vector<12x32xf32>
    %124 = arith.mulf %123, %123 : vector<12x32xf32>
    %cst_53 = arith.constant dense<0.000000e+00> : vector<12xf32>
    %125 = vector.multi_reduction <add>, %124, %cst_53 [1] : vector<12x32xf32> to vector<12xf32>
    %126 = vector.shape_cast %125 : vector<12xf32> to vector<12x1xf32>
    %cst_54 = arith.constant 3.200000e+01 : f32
    %127 = vector.broadcast %cst_54 : f32 to vector<12x1xf32>
    %128 = arith.divf %126, %127 : vector<12x1xf32>
    %cst_55 = arith.constant 9.99999974E-6 : f32
    %129 = vector.broadcast %cst_55 : f32 to vector<12x1xf32>
    %130 = arith.addf %128, %129 : vector<12x1xf32>
    %131 = math.rsqrt %130 : vector<12x1xf32>
    %132 = vector.broadcast %131 : vector<12x1xf32> to vector<12x32xf32>
    %133 = arith.mulf %123, %132 : vector<12x32xf32>
    %134 = vector.broadcast %116 : vector<1x32xf32> to vector<12x32xf32>
    %135 = arith.mulf %133, %134 : vector<12x32xf32>
    %136 = vector.broadcast %117 : vector<1x32xf32> to vector<12x32xf32>
    %137 = arith.addf %135, %136 : vector<12x32xf32>
    %c0_56 = arith.constant 0 : index
    %c0_57 = arith.constant 0 : index
    %c0_58 = arith.constant 0 : index
    %138 = vector.load %arg15[%c0_56, %c0_57, %c0_58] : memref<1x12x32xf32, #tpu.memory_space<vmem>>, vector<1x12x32xf32>
    %139 = vector.shape_cast %138 : vector<1x12x32xf32> to vector<12x32xf32>
    %140 = vector.shape_cast %137 : vector<12x32xf32> to vector<1x12x32xf32>
    tpu.vector_store %arg15[%c0_56, %c0_57, %c0_58], %140 {strides = array<i32>} : memref<1x12x32xf32, #tpu.memory_space<vmem>>, vector<1x12x32xf32>,
    return
  }
  func.func @transform_0(%arg0: i32) -> (i32, i32, i32) {
    %c0_i32 = arith.constant 0 : i32
    %c0_i32_0 = arith.constant 0 : i32
    %c0_i32_1 = arith.constant 0 : i32
    return %arg0, %c0_i32, %c0_i32_0 : i32, i32, i32
  }
  func.func @transform_1(%arg0: i32) -> (i32, i32, i32) {
    %c0_i32 = arith.constant 0 : i32
    %c0_i32_0 = arith.constant 0 : i32
    %c0_i32_1 = arith.constant 0 : i32
    return %arg0, %c0_i32, %c0_i32_0 : i32, i32, i32
  }
  func.func @transform_2(%arg0: i32) -> (i32, i32) {
    %c0_i32 = arith.constant 0 : i32
    %c0_i32_0 = arith.constant 0 : i32
    %c0_i32_1 = arith.constant 0 : i32
    return %c0_i32, %c0_i32_0 : i32, i32
  }
  func.func @transform_3(%arg0: i32) -> (i32, i32) {
    %c0_i32 = arith.constant 0 : i32
    %c0_i32_0 = arith.constant 0 : i32
    %c0_i32_1 = arith.constant 0 : i32
    return %c0_i32, %c0_i32_0 : i32, i32
  }
  func.func @transform_4(%arg0: i32) -> (i32, i32) {
    %c0_i32 = arith.constant 0 : i32
    %c0_i32_0 = arith.constant 0 : i32
    %c0_i32_1 = arith.constant 0 : i32
    return %c0_i32, %c0_i32_0 : i32, i32
  }
  func.func @transform_5(%arg0: i32) -> (i32, i32) {
    %c0_i32 = arith.constant 0 : i32
    %c0_i32_0 = arith.constant 0 : i32
    %c0_i32_1 = arith.constant 0 : i32
    return %c0_i32, %c0_i32_0 : i32, i32
  }
  func.func @transform_6(%arg0: i32) -> (i32, i32) {
    %c0_i32 = arith.constant 0 : i32
    %c0_i32_0 = arith.constant 0 : i32
    %c0_i32_1 = arith.constant 0 : i32
    return %c0_i32, %c0_i32_0 : i32, i32
  }
  func.func @transform_7(%arg0: i32) -> (i32, i32) {
    %c0_i32 = arith.constant 0 : i32
    %c0_i32_0 = arith.constant 0 : i32
    %c0_i32_1 = arith.constant 0 : i32
    return %c0_i32, %c0_i32_0 : i32, i32
  }
  func.func @transform_8(%arg0: i32) -> (i32, i32) {
    %c0_i32 = arith.constant 0 : i32
    %c0_i32_0 = arith.constant 0 : i32
    %c0_i32_1 = arith.constant 0 : i32
    return %c0_i32, %c0_i32_0 : i32, i32
  }
  func.func @transform_9(%arg0: i32) -> (i32, i32) {
    %c0_i32 = arith.constant 0 : i32
    %c0_i32_0 = arith.constant 0 : i32
    %c0_i32_1 = arith.constant 0 : i32
    return %c0_i32, %c0_i32_0 : i32, i32
  }
  func.func @transform_10(%arg0: i32) -> (i32, i32) {
    %c0_i32 = arith.constant 0 : i32
    %c0_i32_0 = arith.constant 0 : i32
    %c0_i32_1 = arith.constant 0 : i32
    return %c0_i32, %c0_i32_0 : i32, i32
  }
  func.func @transform_11(%arg0: i32) -> (i32, i32) {
    %c0_i32 = arith.constant 0 : i32
    %c0_i32_0 = arith.constant 0 : i32
    %c0_i32_1 = arith.constant 0 : i32
    return %c0_i32, %c0_i32_0 : i32, i32
  }
  func.func @transform_12(%arg0: i32) -> (i32, i32) {
    %c0_i32 = arith.constant 0 : i32
    %c0_i32_0 = arith.constant 0 : i32
    %c0_i32_1 = arith.constant 0 : i32
    return %c0_i32, %c0_i32_0 : i32, i32
  }
  func.func @transform_13(%arg0: i32) -> (i32, i32) {
    %c0_i32 = arith.constant 0 : i32
    %c0_i32_0 = arith.constant 0 : i32
    %c0_i32_1 = arith.constant 0 : i32
    return %c0_i32, %c0_i32_0 : i32, i32
  }
  func.func @transform_14(%arg0: i32) -> (i32, i32, i32) {
    %c0_i32 = arith.constant 0 : i32
    %c0_i32_0 = arith.constant 0 : i32
    %c0_i32_1 = arith.constant 0 : i32
    return %arg0, %c0_i32, %c0_i32_0 : i32, i32, i32
  }
}

module attributes {stable_mosaic.version = 11 : i64} {
  func.func @_lm_head_loss_kernel(%arg0: i32, %arg1: memref<24x32xf32, #tpu.memory_space<vmem>>, %arg2: memref<32x32xf32, #tpu.memory_space<vmem>>, %arg3: memref<1x32xf32, #tpu.memory_space<vmem>>, %arg4: memref<1x32xf32, #tpu.memory_space<vmem>>, %arg5: memref<1x32xf32, #tpu.memory_space<vmem>>, %arg6: memref<128x32xf32, #tpu.memory_space<vmem>>, %arg7: memref<1x128xf32, #tpu.memory_space<vmem>>, %arg8: memref<24x1xi32, #tpu.memory_space<vmem>>, %arg9: memref<24x128xf32, #tpu.memory_space<vmem>>, %arg10: memref<1x1xf32, #tpu.memory_space<smem>>) attributes {dimension_semantics = [#tpu.dimension_semantics<arbitrary>], iteration_bounds = array<i64: 1>, scalar_prefetch = 0 : i64, scratch_operands = 0 : i64, tpu.core_type = #tpu.core_type<tc>, window_params = [{pipeline_mode = #tpu.pipeline_mode<synchronous>, transform_indices = @transform_0, window_bounds = array<i64: 24, 32>}, {pipeline_mode = #tpu.pipeline_mode<synchronous>, transform_indices = @transform_1, window_bounds = array<i64: 32, 32>}, {pipeline_mode = #tpu.pipeline_mode<synchronous>, transform_indices = @transform_2, window_bounds = array<i64: 1, 32>}, {pipeline_mode = #tpu.pipeline_mode<synchronous>, transform_indices = @transform_3, window_bounds = array<i64: 1, 32>}, {pipeline_mode = #tpu.pipeline_mode<synchronous>, transform_indices = @transform_4, window_bounds = array<i64: 1, 32>}, {pipeline_mode = #tpu.pipeline_mode<synchronous>, transform_indices = @transform_5, window_bounds = array<i64: 128, 32>}, {pipeline_mode = #tpu.pipeline_mode<synchronous>, transform_indices = @transform_6, window_bounds = array<i64: 1, 128>}, {pipeline_mode = #tpu.pipeline_mode<synchronous>, transform_indices = @transform_7, window_bounds = array<i64: 24, 1>}, {pipeline_mode = #tpu.pipeline_mode<synchronous>, transform_indices = @transform_8, window_bounds = array<i64: 24, 128>}, {transform_indices = @transform_9, window_bounds = array<i64: 1, 1>}]} {
    %c0 = arith.constant 0 : index
    %c0_0 = arith.constant 0 : index
    %0 = vector.load %arg1[%c0, %c0_0] : memref<24x32xf32, #tpu.memory_space<vmem>>, vector<24x32xf32>
    %c0_1 = arith.constant 0 : index
    %c0_2 = arith.constant 0 : index
    %1 = vector.load %arg2[%c0_1, %c0_2] : memref<32x32xf32, #tpu.memory_space<vmem>>, vector<32x32xf32>
    %2 = arith.truncf %0 : vector<24x32xf32> to vector<24x32xbf16>
    %3 = arith.truncf %1 : vector<32x32xf32> to vector<32x32xbf16>
    %cst = arith.constant dense<0.000000e+00> : vector<24x32xf32>
    %4 = tpu.matmul %2, %3, %cst {dimension_numbers = #tpu.dot_dimension_numbers<[1], [0], [0], [1], [0, 0, 1, 1], [], []>} : vector<24x32xbf16>, vector<32x32xbf16>, vector<24x32xf32> -> vector<24x32xf32>
    %c0_3 = arith.constant 0 : index
    %c0_4 = arith.constant 0 : index
    %5 = vector.load %arg3[%c0_3, %c0_4] : memref<1x32xf32, #tpu.memory_space<vmem>>, vector<1x32xf32>
    %6 = vector.broadcast %5 : vector<1x32xf32> to vector<24x32xf32>
    %7 = arith.addf %4, %6 : vector<24x32xf32>
    %8 = arith.mulf %7, %7 : vector<24x32xf32>
    %9 = arith.mulf %7, %8 : vector<24x32xf32>
    %cst_5 = arith.constant 4.471500e-02 : f32
    %10 = vector.broadcast %cst_5 : f32 to vector<24x32xf32>
    %11 = arith.mulf %10, %9 : vector<24x32xf32>
    %12 = arith.addf %7, %11 : vector<24x32xf32>
    %cst_6 = arith.constant 0.797884583 : f32
    %13 = vector.broadcast %cst_6 : f32 to vector<24x32xf32>
    %14 = arith.mulf %13, %12 : vector<24x32xf32>
    %15 = math.tanh %14 : vector<24x32xf32>
    %cst_7 = arith.constant 1.000000e+00 : f32
    %16 = vector.broadcast %cst_7 : f32 to vector<24x32xf32>
    %17 = arith.addf %16, %15 : vector<24x32xf32>
    %cst_8 = arith.constant 5.000000e-01 : f32
    %18 = vector.broadcast %cst_8 : f32 to vector<24x32xf32>
    %19 = arith.mulf %18, %17 : vector<24x32xf32>
    %20 = arith.mulf %7, %19 : vector<24x32xf32>
    %c0_9 = arith.constant 0 : index
    %c0_10 = arith.constant 0 : index
    %21 = vector.load %arg4[%c0_9, %c0_10] : memref<1x32xf32, #tpu.memory_space<vmem>>, vector<1x32xf32>
    %c0_11 = arith.constant 0 : index
    %c0_12 = arith.constant 0 : index
    %22 = vector.load %arg5[%c0_11, %c0_12] : memref<1x32xf32, #tpu.memory_space<vmem>>, vector<1x32xf32>
    %cst_13 = arith.constant dense<0.000000e+00> : vector<24xf32>
    %23 = vector.multi_reduction <add>, %20, %cst_13 [1] : vector<24x32xf32> to vector<24xf32>
    %24 = vector.shape_cast %23 : vector<24xf32> to vector<24x1xf32>
    %cst_14 = arith.constant 3.200000e+01 : f32
    %25 = vector.broadcast %cst_14 : f32 to vector<24x1xf32>
    %26 = arith.divf %24, %25 : vector<24x1xf32>
    %27 = vector.broadcast %26 : vector<24x1xf32> to vector<24x32xf32>
    %28 = arith.subf %20, %27 : vector<24x32xf32>
    %29 = arith.mulf %28, %28 : vector<24x32xf32>
    %cst_15 = arith.constant dense<0.000000e+00> : vector<24xf32>
    %30 = vector.multi_reduction <add>, %29, %cst_15 [1] : vector<24x32xf32> to vector<24xf32>
    %31 = vector.shape_cast %30 : vector<24xf32> to vector<24x1xf32>
    %cst_16 = arith.constant 3.200000e+01 : f32
    %32 = vector.broadcast %cst_16 : f32 to vector<24x1xf32>
    %33 = arith.divf %31, %32 : vector<24x1xf32>
    %cst_17 = arith.constant 9.99999974E-6 : f32
    %34 = vector.broadcast %cst_17 : f32 to vector<24x1xf32>
    %35 = arith.addf %33, %34 : vector<24x1xf32>
    %36 = math.rsqrt %35 : vector<24x1xf32>
    %37 = vector.broadcast %36 : vector<24x1xf32> to vector<24x32xf32>
    %38 = arith.mulf %28, %37 : vector<24x32xf32>
    %39 = vector.broadcast %21 : vector<1x32xf32> to vector<24x32xf32>
    %40 = arith.mulf %38, %39 : vector<24x32xf32>
    %41 = vector.broadcast %22 : vector<1x32xf32> to vector<24x32xf32>
    %42 = arith.addf %40, %41 : vector<24x32xf32>
    %c0_18 = arith.constant 0 : index
    %c0_19 = arith.constant 0 : index
    %43 = vector.load %arg6[%c0_18, %c0_19] : memref<128x32xf32, #tpu.memory_space<vmem>>, vector<128x32xf32>
    %44 = arith.truncf %42 : vector<24x32xf32> to vector<24x32xbf16>
    %45 = arith.truncf %43 : vector<128x32xf32> to vector<128x32xbf16>
    %cst_20 = arith.constant dense<0.000000e+00> : vector<24x128xf32>
    %46 = tpu.matmul %44, %45, %cst_20 {dimension_numbers = #tpu.dot_dimension_numbers<[1], [1], [0], [0], [0, 0, 1, 0], [], []>} : vector<24x32xbf16>, vector<128x32xbf16>, vector<24x128xf32> -> vector<24x128xf32>
    %c0_21 = arith.constant 0 : index
    %c0_22 = arith.constant 0 : index
    %47 = vector.load %arg7[%c0_21, %c0_22] : memref<1x128xf32, #tpu.memory_space<vmem>>, vector<1x128xf32>
    %48 = vector.broadcast %47 : vector<1x128xf32> to vector<24x128xf32>
    %49 = arith.addf %46, %48 : vector<24x128xf32>
    %c0_23 = arith.constant 0 : index
    %c0_24 = arith.constant 0 : index
    %50 = vector.load %arg9[%c0_23, %c0_24] : memref<24x128xf32, #tpu.memory_space<vmem>>, vector<24x128xf32>
    tpu.vector_store %arg9[%c0_23, %c0_24], %49 {strides = array<i32>} : memref<24x128xf32, #tpu.memory_space<vmem>>, vector<24x128xf32>,
    %c0_25 = arith.constant 0 : index
    %c0_26 = arith.constant 0 : index
    %51 = vector.load %arg8[%c0_25, %c0_26] : memref<24x1xi32, #tpu.memory_space<vmem>>, vector<24x1xi32>
    %cst_27 = arith.constant dense<0xFF800000> : vector<24xf32>
    %52 = vector.multi_reduction <maximumf>, %49, %cst_27 [1] : vector<24x128xf32> to vector<24xf32>
    %53 = vector.shape_cast %52 : vector<24xf32> to vector<24x1xf32>
    %54 = vector.broadcast %53 : vector<24x1xf32> to vector<24x128xf32>
    %55 = arith.subf %49, %54 : vector<24x128xf32>
    %56 = math.exp %55 : vector<24x128xf32>
    %cst_28 = arith.constant dense<0.000000e+00> : vector<24xf32>
    %57 = vector.multi_reduction <add>, %56, %cst_28 [1] : vector<24x128xf32> to vector<24xf32>
    %58 = vector.shape_cast %57 : vector<24xf32> to vector<24x1xf32>
    %59 = math.log %58 : vector<24x1xf32>
    %60 = arith.addf %59, %53 : vector<24x1xf32>
    %61 = tpu.iota {dimensions = array<i32: 1>} : vector<24x128xi32>
    %62 = vector.broadcast %51 : vector<24x1xi32> to vector<24x128xi32>
    %63 = arith.cmpi eq, %61, %62 : vector<24x128xi32>
    %cst_29 = arith.constant 0.000000e+00 : f32
    %64 = vector.broadcast %cst_29 : f32 to vector<24x128xf32>
    %65 = arith.select %63, %49, %64 : vector<24x128xi1>, vector<24x128xf32>
    %cst_30 = arith.constant dense<0.000000e+00> : vector<24xf32>
    %66 = vector.multi_reduction <add>, %65, %cst_30 [1] : vector<24x128xf32> to vector<24xf32>
    %67 = vector.shape_cast %66 : vector<24xf32> to vector<24x1xf32>
    %c-100_i32 = arith.constant -100 : i32
    %68 = vector.broadcast %c-100_i32 : i32 to vector<24x1xi32>
    %69 = arith.cmpi ne, %51, %68 : vector<24x1xi32>
    %70 = arith.extui %69 : vector<24x1xi1> to vector<24x1xi32>
    %71 = arith.sitofp %70 : vector<24x1xi32> to vector<24x1xf32>
    %72 = arith.subf %60, %67 : vector<24x1xf32>
    %73 = arith.mulf %71, %72 : vector<24x1xf32>
    %74 = vector.shape_cast %73 : vector<24x1xf32> to vector<1x24x1xf32>
    %cst_31 = arith.constant dense<0.000000e+00> : vector<1xf32>
    %75 = vector.multi_reduction <add>, %74, %cst_31 [1, 2] : vector<1x24x1xf32> to vector<1xf32>
    %76 = vector.shape_cast %75 : vector<1xf32> to vector<1x1x1xf32>
    %77 = vector.extract %76[0, 0, 0] : f32 from vector<1x1x1xf32>
    %78 = vector.shape_cast %71 : vector<24x1xf32> to vector<1x24x1xf32>
    %cst_32 = arith.constant dense<0.000000e+00> : vector<1xf32>
    %79 = vector.multi_reduction <add>, %78, %cst_32 [1, 2] : vector<1x24x1xf32> to vector<1xf32>
    %80 = vector.shape_cast %79 : vector<1xf32> to vector<1x1x1xf32>
    %81 = vector.extract %80[0, 0, 0] : f32 from vector<1x1x1xf32>
    %cst_33 = arith.constant 1.000000e+00 : f32
    %82 = arith.maximumf %81, %cst_33 : f32
    %83 = arith.divf %77, %82 : f32
    %c0_34 = arith.constant 0 : index
    %c0_35 = arith.constant 0 : index
    %84 = memref.load %arg10[%c0_34, %c0_35] : memref<1x1xf32, #tpu.memory_space<smem>>
    memref.store %83, %arg10[%c0_34, %c0_35] : memref<1x1xf32, #tpu.memory_space<smem>>
    return
  }
  func.func @transform_0(%arg0: i32) -> (i32, i32) {
    %c0_i32 = arith.constant 0 : i32
    %c0_i32_0 = arith.constant 0 : i32
    %c0_i32_1 = arith.constant 0 : i32
    return %c0_i32, %c0_i32_0 : i32, i32
  }
  func.func @transform_1(%arg0: i32) -> (i32, i32) {
    %c0_i32 = arith.constant 0 : i32
    %c0_i32_0 = arith.constant 0 : i32
    %c0_i32_1 = arith.constant 0 : i32
    return %c0_i32, %c0_i32_0 : i32, i32
  }
  func.func @transform_2(%arg0: i32) -> (i32, i32) {
    %c0_i32 = arith.constant 0 : i32
    %c0_i32_0 = arith.constant 0 : i32
    %c0_i32_1 = arith.constant 0 : i32
    return %c0_i32, %c0_i32_0 : i32, i32
  }
  func.func @transform_3(%arg0: i32) -> (i32, i32) {
    %c0_i32 = arith.constant 0 : i32
    %c0_i32_0 = arith.constant 0 : i32
    %c0_i32_1 = arith.constant 0 : i32
    return %c0_i32, %c0_i32_0 : i32, i32
  }
  func.func @transform_4(%arg0: i32) -> (i32, i32) {
    %c0_i32 = arith.constant 0 : i32
    %c0_i32_0 = arith.constant 0 : i32
    %c0_i32_1 = arith.constant 0 : i32
    return %c0_i32, %c0_i32_0 : i32, i32
  }
  func.func @transform_5(%arg0: i32) -> (i32, i32) {
    %c0_i32 = arith.constant 0 : i32
    %c0_i32_0 = arith.constant 0 : i32
    %c0_i32_1 = arith.constant 0 : i32
    return %c0_i32, %c0_i32_0 : i32, i32
  }
  func.func @transform_6(%arg0: i32) -> (i32, i32) {
    %c0_i32 = arith.constant 0 : i32
    %c0_i32_0 = arith.constant 0 : i32
    %c0_i32_1 = arith.constant 0 : i32
    return %c0_i32, %c0_i32_0 : i32, i32
  }
  func.func @transform_7(%arg0: i32) -> (i32, i32) {
    %c0_i32 = arith.constant 0 : i32
    %c0_i32_0 = arith.constant 0 : i32
    %c0_i32_1 = arith.constant 0 : i32
    return %c0_i32, %c0_i32_0 : i32, i32
  }
  func.func @transform_8(%arg0: i32) -> (i32, i32) {
    %c0_i32 = arith.constant 0 : i32
    %c0_i32_0 = arith.constant 0 : i32
    %c0_i32_1 = arith.constant 0 : i32
    return %c0_i32, %c0_i32_0 : i32, i32
  }
  func.func @transform_9(%arg0: i32) -> (i32, i32) {
    %c0_i32 = arith.constant 0 : i32
    %c0_i32_0 = arith.constant 0 : i32
    %c0_i32_1 = arith.constant 0 : i32
    return %c0_i32, %c0_i32_0 : i32, i32
  }
}

</mosaic_0001>

<llo_original>
// kernel: prompt_xlmr_forward.4
$region0: #{prompt_xlmr_forward.4}
  #allocation0 [shape = 'u32[]', space=smem, size = 0x4, offset = 0x4, fixed_abs, tag = 'smem constant byte address 0x4 - core index']
  #allocation1 [shape = 'u32[144,128]{1,0:T(1,128)}', space=vmem, size = 0x12000, scoped, tag = 'internal scratch']
  %s0 = inlined_call_operand.vmem [shape: f32[24,32], index: 0, kind: input, shape index: {}]
  %s1 = inlined_call_operand.vmem [shape: f32[1,32], index: 1, kind: input, shape index: {}]
  %s2 = inlined_call_operand.vmem [shape: f32[1,32], index: 2, kind: input, shape index: {}]
  %s3 = inlined_call_operand.vmem [shape: f32[24,32], index: 3, kind: output, shape index: {}]
  %s4 = sld [smem:[#allocation0]]
  $region22: #{prompt_xlmr_forward.4} parent=0
    _
  %s6 = ssub.s32 1, %s4
  %s7 = scalar_select 0, %s6, %s4
  // Predicated region
  $region2: #{prompt_xlmr_forward.4} parent=0 // pred_check
    _
  $region3: #{prompt_xlmr_forward.4} parent=0 // pred_check_branch
    %9 = sbr.rel (0) target = $region5
  $region4: #{prompt_xlmr_forward.4} parent=0 // pred_region
    _
  $region5: #{prompt_xlmr_forward.4} parent=0 // pred_fallthru
    _
  // Predicated region
  $region6: #{prompt_xlmr_forward.4} parent=0 // pred_check
    _
  $region7: #{prompt_xlmr_forward.4} parent=0 // pred_check_branch
    %11 = sbr.rel (0) target = $region9
  $region8: #{prompt_xlmr_forward.4} parent=0 // pred_region
    _
  $region9: #{prompt_xlmr_forward.4} parent=0 // pred_fallthru
    _
  // Predicated region
  $region10: #{prompt_xlmr_forward.4} parent=0 // pred_check
    _
  $region11: #{prompt_xlmr_forward.4} parent=0 // pred_check_branch
    %13 = sbr.rel (0) target = $region13
  $region12: #{prompt_xlmr_forward.4} parent=0 // pred_region
    _
  $region13: #{prompt_xlmr_forward.4} parent=0 // pred_fallthru
    _
  %v14 = vld [vmem:[%s0] sm:$0xff]
  %v15 = vld [vmem:[%s0 + $0x8] sm:$0xff]
  %v16 = vld [vmem:[%s0 + $0x10] sm:$0xff]
  %v17 = vld [vmem:[%s1] sm:$0x1]
  %v18 = vld [vmem:[%s2] sm:$0x1]
  %vm19 = vcmask 261120
  %v20 = vsel %vm19, %v14, 0.0
  %21 = vadd.xlane.f32.xlu0 %v20
  %v22 = vpop.xlane.xlu0 %21
  %v23 = vsel %vm19, %v15, 0.0
  %24 = vadd.xlane.f32.xlu0 %v23
  %v25 = vpop.xlane.xlu0 %24
  %v26 = vsel %vm19, %v16, 0.0
  %27 = vadd.xlane.f32.xlu0 %v26
  %v28 = vpop.xlane.xlu0 %27
  %v29 = vrcp.pop 32.0
  %v30 = vmul.f32 %v22, %v29
  %v31 = vmul.f32 %v25, %v29
  %v32 = vmul.f32 %v28, %v29
  %v33 = vsub.f32 %v14, %v30
  %v34 = vsub.f32 %v15, %v31
  %v35 = vsub.f32 %v16, %v32
  %v36 = vmul.f32 %v33, %v33
  %v37 = vmul.f32 %v34, %v34
  %v38 = vmul.f32 %v35, %v35
  %v39 = vsel %vm19, %v36, 0.0
  %40 = vadd.xlane.f32.xlu0 %v39
  %v41 = vpop.xlane.xlu0 %40
  %v42 = vsel %vm19, %v37, 0.0
  %43 = vadd.xlane.f32.xlu0 %v42
  %v44 = vpop.xlane.xlu0 %43
  %v45 = vsel %vm19, %v38, 0.0
  %46 = vadd.xlane.f32.xlu0 %v45
  %v47 = vpop.xlane.xlu0 %46
  %v48 = vmul.f32 %v41, %v29
  %v49 = vmul.f32 %v44, %v29
  %v50 = vmul.f32 %v47, %v29
  %v51 = vadd.f32 %v48, 1e-05
  %v52 = vadd.f32 %v49, 1e-05
  %v53 = vadd.f32 %v50, 1e-05
  %v54 = vrsqrt.pop %v51
  %v55 = vrsqrt.pop %v52
  %v56 = vrsqrt.pop %v53
  %v57 = vmul.f32 %v33, %v54
  %v58 = vmul.f32 %v34, %v55
  %v59 = vmul.f32 %v35, %v56
  %v61 = vlaneseq
  %v62 = vshrl.u32 %v61, 7
  %v63 = vsub.s32 0, %v62
  %v64 = vrot.slane %v17, %v63
  %v66 = vmul.f32 %v57, %v64
  %v67 = vmul.f32 %v58, %v64
  %v68 = vmul.f32 %v59, %v64
  %v70 = vlaneseq
  %v71 = vshrl.u32 %v70, 7
  %v72 = vsub.s32 0, %v71
  %v73 = vrot.slane %v18, %v72
  %v75 = vadd.f32 %v66, %v73
  %v76 = vadd.f32 %v67, %v73
  %v77 = vadd.f32 %v68, %v73
  %78 = vst.msk [vmem:[%s3] sm:$0xff] %vm19, %v75
  %79 = vst.msk [vmem:[%s3 + $0x8] sm:$0xff] %vm19, %v76
  %80 = vst.msk [vmem:[%s3 + $0x10] sm:$0xff] %vm19, %v77
  // Predicated region
  $region14: #{prompt_xlmr_forward.4} parent=0 // pred_check
    _
  $region15: #{prompt_xlmr_forward.4} parent=0 // pred_check_branch
    %82 = sbr.rel (0) target = $region17
  $region16: #{prompt_xlmr_forward.4} parent=0 // pred_region
    _
  $region17: #{prompt_xlmr_forward.4} parent=0 // pred_fallthru
    _
  // Predicated region
  $region18: #{prompt_xlmr_forward.4} parent=0 // pred_check
    _
  $region19: #{prompt_xlmr_forward.4} parent=0 // pred_check_branch
    %84 = sbr.rel (0) target = $region21
  $region20: #{prompt_xlmr_forward.4} parent=0 // pred_region
    _
  $region21: #{prompt_xlmr_forward.4} parent=0 // pred_fallthru
    _

// kernel: prompt_xlmr_forward.5
$region0: #{prompt_xlmr_forward.5}
  #allocation0 [shape = 'u32[]', space=smem, size = 0x4, offset = 0x4, fixed_abs, tag = 'smem constant byte address 0x4 - core index']
  #allocation1 [shape = 'u32[144,128]{1,0:T(1,128)}', space=vmem, size = 0x12000, scoped, tag = 'internal scratch']
  %s0 = inlined_call_operand.vmem [shape: f32[2,12,32], index: 0, kind: input, shape index: {}]
  %s1 = inlined_call_operand.vmem [shape: f32[2,1,12], index: 1, kind: input, shape index: {}]
  %s2 = inlined_call_operand.vmem [shape: f32[32,96], index: 2, kind: input, shape index: {}]
  %s3 = inlined_call_operand.vmem [shape: f32[1,96], index: 3, kind: input, shape index: {}]
  %s4 = inlined_call_operand.vmem [shape: f32[32,32], index: 4, kind: input, shape index: {}]
  %s5 = inlined_call_operand.vmem [shape: f32[1,32], index: 5, kind: input, shape index: {}]
  %s6 = inlined_call_operand.vmem [shape: f32[1,32], index: 6, kind: input, shape index: {}]
  %s7 = inlined_call_operand.vmem [shape: f32[1,32], index: 7, kind: input, shape index: {}]
  %s8 = inlined_call_operand.vmem [shape: f32[32,64], index: 8, kind: input, shape index: {}]
  %s9 = inlined_call_operand.vmem [shape: f32[1,64], index: 9, kind: input, shape index: {}]
  %s10 = inlined_call_operand.vmem [shape: f32[64,32], index: 10, kind: input, shape index: {}]
  %s11 = inlined_call_operand.vmem [shape: f32[1,32], index: 11, kind: input, shape index: {}]
  %s12 = inlined_call_operand.vmem [shape: f32[1,32], index: 12, kind: input, shape index: {}]
  %s13 = inlined_call_operand.vmem [shape: f32[1,32], index: 13, kind: input, shape index: {}]
  %s14 = inlined_call_operand.vmem [shape: f32[2,12,32], index: 14, kind: output, shape index: {}]
  %s15 = sld [smem:[#allocation0]]
  $region89: #{prompt_xlmr_forward.5} parent=0
    _
  %s17 = ssub.s32 1, %s15
  %s18 = scalar_select 0, %s17, %s15
  loop: start=0, step=1, limit=4
  $region2: #{prompt_xlmr_forward.5} parent=0 // loop_pre_header
    _
  $region3: #{prompt_xlmr_forward.5} parent=0 // loop_header
    %s20 = sphi 0, %s24
    %p21 = scmp.ge.s32.totalorder %s20, 4
    %s30 = sphi 0, %s32
    %s33 = sphi 0, %s30
    %s34 = sphi 0, %s33
    %s50 = sphi 0, %s34
    %s56 = sphi 0, %s58
    %s59 = sphi 0, %s56
    %s60 = sphi 0, %s59
    %s76 = sphi 0, %s60
    %s80 = sphi 0, %s80
    %s82 = sphi 0, %s80
    %s83 = sphi 0, %s82
    %s97 = sphi 0, %s83
    %s101 = sphi 0, %s101
    %s103 = sphi 0, %s101
    %s104 = sphi 0, %s103
    %s118 = sphi 0, %s104
    %s122 = sphi 0, %s122
    %s124 = sphi 0, %s122
    %s125 = sphi 0, %s124
    %s139 = sphi 0, %s125
    %s143 = sphi 0, %s143
    %s145 = sphi 0, %s143
    %s146 = sphi 0, %s145
    %s160 = sphi 0, %s146
    %s164 = sphi 0, %s164
    %s166 = sphi 0, %s164
    %s167 = sphi 0, %s166
    %s181 = sphi 0, %s167
    %s185 = sphi 0, %s185
    %s187 = sphi 0, %s185
    %s188 = sphi 0, %s187
    %s202 = sphi 0, %s188
    %s206 = sphi 0, %s206
    %s208 = sphi 0, %s206
    %s209 = sphi 0, %s208
    %s223 = sphi 0, %s209
    %s227 = sphi 0, %s227
    %s229 = sphi 0, %s227
    %s230 = sphi 0, %s229
    %s244 = sphi 0, %s230
    %s248 = sphi 0, %s248
    %s250 = sphi 0, %s248
    %s251 = sphi 0, %s250
    %s265 = sphi 0, %s251
    %s269 = sphi 0, %s269
    %s271 = sphi 0, %s269
    %s272 = sphi 0, %s271
    %s286 = sphi 0, %s272
    %s290 = sphi 0, %s290
    %s292 = sphi 0, %s290
    %s293 = sphi 0, %s292
    %s307 = sphi 0, %s293
    %s311 = sphi 0, %s311
    %s313 = sphi 0, %s311
    %s314 = sphi 0, %s313
    %s328 = sphi 0, %s314
    %s334 = sphi 0, %s336
    %s337 = sphi 0, %s334
    %s338 = sphi 0, %s337
    %s354 = sphi 0, %s338
  $region4: #{prompt_xlmr_forward.5} parent=0 // loop_header_branch
    %23 = sbr.rel (%p21) target = $region8
  $region5: #{prompt_xlmr_forward.5} parent=0 // loop_body
    %s25 = ssub.s32 %s20, 1
    %s26 = ssub.s32 %s20, 2
    %s27 = sadd.s32 %s20, 1
    %s28 = ssub.s32 %s20, %s27
    %p29 = scmp.eq.s32.totalorder %s28, 0
    %s31 = sadd.s32 %s30, 1
    %s32 = scalar_select %p29, %s30, %s31
    %p35 = pneg %p29
    %p36 = scmp.eq.s32.totalorder %s20, 1
    %p37 = por %p35, %p36
    %p38 = scmp.ne.s32.totalorder %s30, %s33
    %p39 = scmp.eq.s32.totalorder %s20, 0
    %p40 = por %p38, %p39
    %p41 = scmp.ne.s32.totalorder %s30, %s33
    %p42 = scmp.eq.s32.totalorder %s25, 1
    %p43 = por %p41, %p42
    %p44 = scmp.ne.s32.totalorder %s33, %s34
    %p45 = scmp.eq.s32.totalorder %s25, 0
    %p46 = por %p44, %p45
    %p47 = scmp.ne.s32.totalorder %s33, %s34
    %p48 = scmp.eq.s32.totalorder %s26, 1
    %p49 = por %p47, %p48
    %p51 = scmp.ne.s32.totalorder %s34, %s50
    %p52 = scmp.eq.s32.totalorder %s26, 0
    %p53 = por %p51, %p52
    %s54 = ssub.s32 %s20, %s27
    %p55 = scmp.eq.s32.totalorder %s54, 0
    %s57 = sadd.s32 %s56, 1
    %s58 = scalar_select %p55, %s56, %s57
    %p61 = pneg %p55
    %p62 = scmp.eq.s32.totalorder %s20, 1
    %p63 = por %p61, %p62
    %p64 = scmp.ne.s32.totalorder %s56, %s59
    %p65 = scmp.eq.s32.totalorder %s20, 0
    %p66 = por %p64, %p65
    %p67 = scmp.ne.s32.totalorder %s56, %s59
    %p68 = scmp.eq.s32.totalorder %s25, 1
    %p69 = por %p67, %p68
    %p70 = scmp.ne.s32.totalorder %s59, %s60
    %p71 = scmp.eq.s32.totalorder %s25, 0
    %p72 = por %p70, %p71
    %p73 = scmp.ne.s32.totalorder %s59, %s60
    %p74 = scmp.eq.s32.totalorder %s26, 1
    %p75 = por %p73, %p74
    %p77 = scmp.ne.s32.totalorder %s60, %s76
    %p78 = scmp.eq.s32.totalorder %s26, 0
    %p79 = por %p77, %p78
    %s81 = sadd.s32 %s80, 1
    %p84 = scmp.eq.s32.totalorder %s20, 1
    %p85 = scmp.ne.s32.totalorder %s80, %s82
    %p86 = scmp.eq.s32.totalorder %s20, 0
    %p87 = por %p85, %p86
    %p88 = scmp.ne.s32.totalorder %s80, %s82
    %p89 = scmp.eq.s32.totalorder %s25, 1
    %p90 = por %p88, %p89
    %p91 = scmp.ne.s32.totalorder %s82, %s83
    %p92 = scmp.eq.s32.totalorder %s25, 0
    %p93 = por %p91, %p92
    %p94 = scmp.ne.s32.totalorder %s82, %s83
    %p95 = scmp.eq.s32.totalorder %s26, 1
    %p96 = por %p94, %p95
    %p98 = scmp.ne.s32.totalorder %s83, %s97
    %p99 = scmp.eq.s32.totalorder %s26, 0
    %p100 = por %p98, %p99
    %s102 = sadd.s32 %s101, 1
    %p105 = scmp.eq.s32.totalorder %s20, 1
    %p106 = scmp.ne.s32.totalorder %s101, %s103
    %p107 = scmp.eq.s32.totalorder %s20, 0
    %p108 = por %p106, %p107
    %p109 = scmp.ne.s32.totalorder %s101, %s103
    %p110 = scmp.eq.s32.totalorder %s25, 1
    %p111 = por %p109, %p110
    %p112 = scmp.ne.s32.totalorder %s103, %s104
    %p113 = scmp.eq.s32.totalorder %s25, 0
    %p114 = por %p112, %p113
    %p115 = scmp.ne.s32.totalorder %s103, %s104
    %p116 = scmp.eq.s32.totalorder %s26, 1
    %p117 = por %p115, %p116
    %p119 = scmp.ne.s32.totalorder %s104, %s118
    %p120 = scmp.eq.s32.totalorder %s26, 0
    %p121 = por %p119, %p120
    %s123 = sadd.s32 %s122, 1
    %p126 = scmp.eq.s32.totalorder %s20, 1
    %p127 = scmp.ne.s32.totalorder %s122, %s124
    %p128 = scmp.eq.s32.totalorder %s20, 0
    %p129 = por %p127, %p128
    %p130 = scmp.ne.s32.totalorder %s122, %s124
    %p131 = scmp.eq.s32.totalorder %s25, 1
    %p132 = por %p130, %p131
    %p133 = scmp.ne.s32.totalorder %s124, %s125
    %p134 = scmp.eq.s32.totalorder %s25, 0
    %p135 = por %p133, %p134
    %p136 = scmp.ne.s32.totalorder %s124, %s125
    %p137 = scmp.eq.s32.totalorder %s26, 1
    %p138 = por %p136, %p137
    %p140 = scmp.ne.s32.totalorder %s125, %s139
    %p141 = scmp.eq.s32.totalorder %s26, 0
    %p142 = por %p140, %p141
    %s144 = sadd.s32 %s143, 1
    %p147 = scmp.eq.s32.totalorder %s20, 1
    %p148 = scmp.ne.s32.totalorder %s143, %s145
    %p149 = scmp.eq.s32.totalorder %s20, 0
    %p150 = por %p148, %p149
    %p151 = scmp.ne.s32.totalorder %s143, %s145
    %p152 = scmp.eq.s32.totalorder %s25, 1
    %p153 = por %p151, %p152
    %p154 = scmp.ne.s32.totalorder %s145, %s146
    %p155 = scmp.eq.s32.totalorder %s25, 0
    %p156 = por %p154, %p155
    %p157 = scmp.ne.s32.totalorder %s145, %s146
    %p158 = scmp.eq.s32.totalorder %s26, 1
    %p159 = por %p157, %p158
    %p161 = scmp.ne.s32.totalorder %s146, %s160
    %p162 = scmp.eq.s32.totalorder %s26, 0
    %p163 = por %p161, %p162
    %s165 = sadd.s32 %s164, 1
    %p168 = scmp.eq.s32.totalorder %s20, 1
    %p169 = scmp.ne.s32.totalorder %s164, %s166
    %p170 = scmp.eq.s32.totalorder %s20, 0
    %p171 = por %p169, %p170
    %p172 = scmp.ne.s32.totalorder %s164, %s166
    %p173 = scmp.eq.s32.totalorder %s25, 1
    %p174 = por %p172, %p173
    %p175 = scmp.ne.s32.totalorder %s166, %s167
    %p176 = scmp.eq.s32.totalorder %s25, 0
    %p177 = por %p175, %p176
    %p178 = scmp.ne.s32.totalorder %s166, %s167
    %p179 = scmp.eq.s32.totalorder %s26, 1
    %p180 = por %p178, %p179
    %p182 = scmp.ne.s32.totalorder %s167, %s181
    %p183 = scmp.eq.s32.totalorder %s26, 0
    %p184 = por %p182, %p183
    %s186 = sadd.s32 %s185, 1
    %p189 = scmp.eq.s32.totalorder %s20, 1
    %p190 = scmp.ne.s32.totalorder %s185, %s187
    %p191 = scmp.eq.s32.totalorder %s20, 0
    %p192 = por %p190, %p191
    %p193 = scmp.ne.s32.totalorder %s185, %s187
    %p194 = scmp.eq.s32.totalorder %s25, 1
    %p195 = por %p193, %p194
    %p196 = scmp.ne.s32.totalorder %s187, %s188
    %p197 = scmp.eq.s32.totalorder %s25, 0
    %p198 = por %p196, %p197
    %p199 = scmp.ne.s32.totalorder %s187, %s188
    %p200 = scmp.eq.s32.totalorder %s26, 1
    %p201 = por %p199, %p200
    %p203 = scmp.ne.s32.totalorder %s188, %s202
    %p204 = scmp.eq.s32.totalorder %s26, 0
    %p205 = por %p203, %p204
    %s207 = sadd.s32 %s206, 1
    %p210 = scmp.eq.s32.totalorder %s20, 1
    %p211 = scmp.ne.s32.totalorder %s206, %s208
    %p212 = scmp.eq.s32.totalorder %s20, 0
    %p213 = por %p211, %p212
    %p214 = scmp.ne.s32.totalorder %s206, %s208
    %p215 = scmp.eq.s32.totalorder %s25, 1
    %p216 = por %p214, %p215
    %p217 = scmp.ne.s32.totalorder %s208, %s209
    %p218 = scmp.eq.s32.totalorder %s25, 0
    %p219 = por %p217, %p218
    %p220 = scmp.ne.s32.totalorder %s208, %s209
    %p221 = scmp.eq.s32.totalorder %s26, 1
    %p222 = por %p220, %p221
    %p224 = scmp.ne.s32.totalorder %s209, %s223
    %p225 = scmp.eq.s32.totalorder %s26, 0
    %p226 = por %p224, %p225
    %s228 = sadd.s32 %s227, 1
    %p231 = scmp.eq.s32.totalorder %s20, 1
    %p232 = scmp.ne.s32.totalorder %s227, %s229
    %p233 = scmp.eq.s32.totalorder %s20, 0
    %p234 = por %p232, %p233
    %p235 = scmp.ne.s32.totalorder %s227, %s229
    %p236 = scmp.eq.s32.totalorder %s25, 1
    %p237 = por %p235, %p236
    %p238 = scmp.ne.s32.totalorder %s229, %s230
    %p239 = scmp.eq.s32.totalorder %s25, 0
    %p240 = por %p238, %p239
    %p241 = scmp.ne.s32.totalorder %s229, %s230
    %p242 = scmp.eq.s32.totalorder %s26, 1
    %p243 = por %p241, %p242
    %p245 = scmp.ne.s32.totalorder %s230, %s244
    %p246 = scmp.eq.s32.totalorder %s26, 0
    %p247 = por %p245, %p246
    %s249 = sadd.s32 %s248, 1
    %p252 = scmp.eq.s32.totalorder %s20, 1
    %p253 = scmp.ne.s32.totalorder %s248, %s250
    %p254 = scmp.eq.s32.totalorder %s20, 0
    %p255 = por %p253, %p254
    %p256 = scmp.ne.s32.totalorder %s248, %s250
    %p257 = scmp.eq.s32.totalorder %s25, 1
    %p258 = por %p256, %p257
    %p259 = scmp.ne.s32.totalorder %s250, %s251
    %p260 = scmp.eq.s32.totalorder %s25, 0
    %p261 = por %p259, %p260
    %p262 = scmp.ne.s32.totalorder %s250, %s251
    %p263 = scmp.eq.s32.totalorder %s26, 1
    %p264 = por %p262, %p263
    %p266 = scmp.ne.s32.totalorder %s251, %s265
    %p267 = scmp.eq.s32.totalorder %s26, 0
    %p268 = por %p266, %p267
    %s270 = sadd.s32 %s269, 1
    %p273 = scmp.eq.s32.totalorder %s20, 1
    %p274 = scmp.ne.s32.totalorder %s269, %s271
    %p275 = scmp.eq.s32.totalorder %s20, 0
    %p276 = por %p274, %p275
    %p277 = scmp.ne.s32.totalorder %s269, %s271
    %p278 = scmp.eq.s32.totalorder %s25, 1
    %p279 = por %p277, %p278
    %p280 = scmp.ne.s32.totalorder %s271, %s272
    %p281 = scmp.eq.s32.totalorder %s25, 0
    %p282 = por %p280, %p281
    %p283 = scmp.ne.s32.totalorder %s271, %s272
    %p284 = scmp.eq.s32.totalorder %s26, 1
    %p285 = por %p283, %p284
    %p287 = scmp.ne.s32.totalorder %s272, %s286
    %p288 = scmp.eq.s32.totalorder %s26, 0
    %p289 = por %p287, %p288
    %s291 = sadd.s32 %s290, 1
    %p294 = scmp.eq.s32.totalorder %s20, 1
    %p295 = scmp.ne.s32.totalorder %s290, %s292
    %p296 = scmp.eq.s32.totalorder %s20, 0
    %p297 = por %p295, %p296
    %p298 = scmp.ne.s32.totalorder %s290, %s292
    %p299 = scmp.eq.s32.totalorder %s25, 1
    %p300 = por %p298, %p299
    %p301 = scmp.ne.s32.totalorder %s292, %s293
    %p302 = scmp.eq.s32.totalorder %s25, 0
    %p303 = por %p301, %p302
    %p304 = scmp.ne.s32.totalorder %s292, %s293
    %p305 = scmp.eq.s32.totalorder %s26, 1
    %p306 = por %p304, %p305
    %p308 = scmp.ne.s32.totalorder %s293, %s307
    %p309 = scmp.eq.s32.totalorder %s26, 0
    %p310 = por %p308, %p309
    %s312 = sadd.s32 %s311, 1
    %p315 = scmp.eq.s32.totalorder %s20, 1
    %p316 = scmp.ne.s32.totalorder %s311, %s313
    %p317 = scmp.eq.s32.totalorder %s20, 0
    %p318 = por %p316, %p317
    %p319 = scmp.ne.s32.totalorder %s311, %s313
    %p320 = scmp.eq.s32.totalorder %s25, 1
    %p321 = por %p319, %p320
    %p322 = scmp.ne.s32.totalorder %s313, %s314
    %p323 = scmp.eq.s32.totalorder %s25, 0
    %p324 = por %p322, %p323
    %p325 = scmp.ne.s32.totalorder %s313, %s314
    %p326 = scmp.eq.s32.totalorder %s26, 1
    %p327 = por %p325, %p326
    %p329 = scmp.ne.s32.totalorder %s314, %s328
    %p330 = scmp.eq.s32.totalorder %s26, 0
    %p331 = por %p329, %p330
    %s332 = ssub.s32 %s20, %s27
    %p333 = scmp.eq.s32.totalorder %s332, 0
    %s335 = sadd.s32 %s334, 1
    %s336 = scalar_select %p333, %s334, %s335
    %p339 = pneg %p333
    %p340 = scmp.eq.s32.totalorder %s20, 1
    %p341 = por %p339, %p340
    %p342 = scmp.ne.s32.totalorder %s334, %s337
    %p343 = scmp.eq.s32.totalorder %s20, 0
    %p344 = por %p342, %p343
    %p345 = scmp.ne.s32.totalorder %s334, %s337
    %p346 = scmp.eq.s32.totalorder %s25, 1
    %p347 = por %p345, %p346
    %p348 = scmp.ne.s32.totalorder %s337, %s338
    %p349 = scmp.eq.s32.totalorder %s25, 0
    %p350 = por %p348, %p349
    %p351 = scmp.ne.s32.totalorder %s337, %s338
    %p352 = scmp.eq.s32.totalorder %s26, 1
    %p353 = por %p351, %p352
    %p355 = scmp.ne.s32.totalorder %s338, %s354
    %p356 = scmp.eq.s32.totalorder %s26, 0
    %p357 = por %p355, %p356
    %p358 = scmp.le.s32.totalorder 1, %s20
    %p359 = scmp.lt.s32.totalorder %s20, 3
    %p360 = pnand %p358, %p359
    %p361 = pneg %p360
    // Predicated region
    $region9: #{prompt_xlmr_forward.5} parent=5 // pred_check
      _
    $region10: #{prompt_xlmr_forward.5} parent=5 // pred_check_branch
      %363 = sbr.rel (%p360) target = $region12
    $region11: #{prompt_xlmr_forward.5} parent=5 // pred_region
      %s364 = ssub.s32 %s20, 1
      // Predicated region
      $region13: #{prompt_xlmr_forward.5} parent=11 // pred_check
        %p365 = pneg %p93
      $region14: #{prompt_xlmr_forward.5} parent=11 // pred_check_branch
        %367 = sbr.rel (%p365) target = $region16
      $region15: #{prompt_xlmr_forward.5} parent=11 // pred_region
        _
      $region16: #{prompt_xlmr_forward.5} parent=11 // pred_fallthru
        _
      // Predicated region
      $region17: #{prompt_xlmr_forward.5} parent=11 // pred_check
        %p368 = pneg %p114
      $region18: #{prompt_xlmr_forward.5} parent=11 // pred_check_branch
        %370 = sbr.rel (%p368) target = $region20
      $region19: #{prompt_xlmr_forward.5} parent=11 // pred_region
        _
      $region20: #{prompt_xlmr_forward.5} parent=11 // pred_fallthru
        _
      // Predicated region
      $region21: #{prompt_xlmr_forward.5} parent=11 // pred_check
        %p371 = pneg %p135
      $region22: #{prompt_xlmr_forward.5} parent=11 // pred_check_branch
        %373 = sbr.rel (%p371) target = $region24
      $region23: #{prompt_xlmr_forward.5} parent=11 // pred_region
        _
      $region24: #{prompt_xlmr_forward.5} parent=11 // pred_fallthru
        _
      // Predicated region
      $region25: #{prompt_xlmr_forward.5} parent=11 // pred_check
        %p374 = pneg %p156
      $region26: #{prompt_xlmr_forward.5} parent=11 // pred_check_branch
        %376 = sbr.rel (%p374) target = $region28
      $region27: #{prompt_xlmr_forward.5} parent=11 // pred_region
        _
      $region28: #{prompt_xlmr_forward.5} parent=11 // pred_fallthru
        _
      // Predicated region
      $region29: #{prompt_xlmr_forward.5} parent=11 // pred_check
        %p377 = pneg %p177
      $region30: #{prompt_xlmr_forward.5} parent=11 // pred_check_branch
        %379 = sbr.rel (%p377) target = $region32
      $region31: #{prompt_xlmr_forward.5} parent=11 // pred_region
        _
      $region32: #{prompt_xlmr_forward.5} parent=11 // pred_fallthru
        _
      // Predicated region
      $region33: #{prompt_xlmr_forward.5} parent=11 // pred_check
        %p380 = pneg %p198
      $region34: #{prompt_xlmr_forward.5} parent=11 // pred_check_branch
        %382 = sbr.rel (%p380) target = $region36
      $region35: #{prompt_xlmr_forward.5} parent=11 // pred_region
        _
      $region36: #{prompt_xlmr_forward.5} parent=11 // pred_fallthru
        _
      // Predicated region
      $region37: #{prompt_xlmr_forward.5} parent=11 // pred_check
        %p383 = pneg %p219
      $region38: #{prompt_xlmr_forward.5} parent=11 // pred_check_branch
        %385 = sbr.rel (%p383) target = $region40
      $region39: #{prompt_xlmr_forward.5} parent=11 // pred_region
        _
      $region40: #{prompt_xlmr_forward.5} parent=11 // pred_fallthru
        _
      // Predicated region
      $region41: #{prompt_xlmr_forward.5} parent=11 // pred_check
        %p386 = pneg %p240
      $region42: #{prompt_xlmr_forward.5} parent=11 // pred_check_branch
        %388 = sbr.rel (%p386) target = $region44
      $region43: #{prompt_xlmr_forward.5} parent=11 // pred_region
        _
      $region44: #{prompt_xlmr_forward.5} parent=11 // pred_fallthru
        _
      // Predicated region
      $region45: #{prompt_xlmr_forward.5} parent=11 // pred_check
        %p389 = pneg %p261
      $region46: #{prompt_xlmr_forward.5} parent=11 // pred_check_branch
        %391 = sbr.rel (%p389) target = $region48
      $region47: #{prompt_xlmr_forward.5} parent=11 // pred_region
        _
      $region48: #{prompt_xlmr_forward.5} parent=11 // pred_fallthru
        _
      // Predicated region
      $region49: #{prompt_xlmr_forward.5} parent=11 // pred_check
        %p392 = pneg %p282
      $region50: #{prompt_xlmr_forward.5} parent=11 // pred_check_branch
        %394 = sbr.rel (%p392) target = $region52
      $region51: #{prompt_xlmr_forward.5} parent=11 // pred_region
        _
      $region52: #{prompt_xlmr_forward.5} parent=11 // pred_fallthru
        _
      // Predicated region
      $region53: #{prompt_xlmr_forward.5} parent=11 // pred_check
        %p395 = pneg %p303
      $region54: #{prompt_xlmr_forward.5} parent=11 // pred_check_branch
        %397 = sbr.rel (%p395) target = $region56
      $region55: #{prompt_xlmr_forward.5} parent=11 // pred_region
        _
      $region56: #{prompt_xlmr_forward.5} parent=11 // pred_fallthru
        _
      // Predicated region
      $region57: #{prompt_xlmr_forward.5} parent=11 // pred_check
        %p398 = pneg %p324
      $region58: #{prompt_xlmr_forward.5} parent=11 // pred_check_branch
        %400 = sbr.rel (%p398) target = $region60
      $region59: #{prompt_xlmr_forward.5} parent=11 // pred_region
        _
      $region60: #{prompt_xlmr_forward.5} parent=11 // pred_fallthru
        _
    $region12: #{prompt_xlmr_forward.5} parent=5 // pred_fallthru
      _
    %p401 = scmp.lt.s32.totalorder %s20, 2
    // Predicated region
    $region61: #{prompt_xlmr_forward.5} parent=5 // pred_check
      %p402 = pneg %p401
    $region62: #{prompt_xlmr_forward.5} parent=5 // pred_check_branch
      %404 = sbr.rel (%p402) target = $region64
    $region63: #{prompt_xlmr_forward.5} parent=5 // pred_region
      // Predicated region
      $region65: #{prompt_xlmr_forward.5} parent=63 // pred_check
        %p405 = pneg %p40
      $region66: #{prompt_xlmr_forward.5} parent=63 // pred_check_branch
        %407 = sbr.rel (%p405) target = $region68
      $region67: #{prompt_xlmr_forward.5} parent=63 // pred_region
        %p408 = scmp.lt.s32.totalorder %s20, 1
        %s409 = scalar_select %p408, %s20, 1
        %s410 = smul.addr %s409, 2
        %s411 = smul.addr %s410, 8
        %s412 = scalar_lea.vmem %s0, %s411
      $region68: #{prompt_xlmr_forward.5} parent=63 // pred_fallthru
        _
      // Predicated region
      $region69: #{prompt_xlmr_forward.5} parent=63 // pred_check
        %p413 = pneg %p66
      $region70: #{prompt_xlmr_forward.5} parent=63 // pred_check_branch
        %415 = sbr.rel (%p413) target = $region72
      $region71: #{prompt_xlmr_forward.5} parent=63 // pred_region
        %p416 = scmp.lt.s32.totalorder %s20, 1
        %s417 = scalar_select %p416, %s20, 1
        %s418 = scalar_lea.vmem %s1, %s417
      $region72: #{prompt_xlmr_forward.5} parent=63 // pred_fallthru
        _
    $region64: #{prompt_xlmr_forward.5} parent=5 // pred_fallthru
      _
    %p419 = scmp.le.s32.totalorder 1, %s20
    %p420 = scmp.lt.s32.totalorder %s20, 3
    %p421 = pnand %p419, %p420
    %p422 = pneg %p421
    // Predicated region
    $region73: #{prompt_xlmr_forward.5} parent=5 // pred_check
      _
    $region74: #{prompt_xlmr_forward.5} parent=5 // pred_check_branch
      %424 = sbr.rel (%p421) target = $region76
    $region75: #{prompt_xlmr_forward.5} parent=5 // pred_region
      %s425 = ssub.s32 %s20, 1
      %p426 = scmp.lt.s32.totalorder %s25, 1
      %s427 = scalar_select %p426, %s25, 1
      %s428 = smul.addr %s427, 2
      %s429 = smul.addr %s428, 8
      %s430 = scalar_lea.vmem %s0, %s429
      %p431 = pneg %p46
      %p432 = pneg %p43
      %p433 = scmp.lt.s32.totalorder %s25, 1
      %s434 = scalar_select %p433, %s25, 1
      %s435 = scalar_lea.vmem %s1, %s434
      %p436 = pneg %p72
      %p437 = pneg %p69
      %p438 = pneg %p93
      %p439 = pneg %p90
      %p440 = pneg %p114
      %p441 = pneg %p111
      %p442 = pneg %p135
      %p443 = pneg %p132
      %p444 = pneg %p156
      %p445 = pneg %p153
      %p446 = pneg %p177
      %p447 = pneg %p174
      %p448 = pneg %p198
      %p449 = pneg %p195
      %p450 = pneg %p219
      %p451 = pneg %p216
      %p452 = pneg %p240
      %p453 = pneg %p237
      %p454 = pneg %p261
      %p455 = pneg %p258
      %p456 = pneg %p282
      %p457 = pneg %p279
      %p458 = pneg %p303
      %p459 = pneg %p300
      %p460 = pneg %p324
      %p461 = pneg %p321
      %p462 = pneg %p350
      %p463 = pneg %p347
      %p464 = scmp.lt.s32.totalorder %s25, 1
      %s465 = scalar_select %p464, %s25, 1
      %s466 = smul.addr %s465, 2
      %s467 = smul.addr %s466, 8
      %s468 = scalar_lea.vmem %s14, %s467
      %p469 = scmp.lt.s32.totalorder %s25, 1
      %s470 = scalar_select %p469, %s25, 1
      %s471 = smul.addr %s470, 2
      %s472 = smul.addr %s471, 8
      %s473 = scalar_lea.vmem %s0, %s472
      %p474 = scmp.lt.s32.totalorder %s25, 1
      %s475 = scalar_select %p474, %s25, 1
      %s476 = scalar_lea.vmem %s1, %s475
      %p477 = scmp.lt.s32.totalorder %s25, 1
      %s478 = scalar_select %p477, %s25, 1
      %s479 = smul.addr %s478, 2
      %s480 = smul.addr %s479, 8
      %s481 = scalar_lea.vmem %s14, %s480
      %v483 = vld [vmem:[%s473] sm:$0xff]
      %v484 = vld [vmem:[%s473 + $0x8] sm:$0xf]
      %v485 = vld [vmem:[%s476] sm:$0x1]
      %v486 = vld [vmem:[%s2] sm:$0xff]
      %v487 = vld [vmem:[%s2 + $0x8] sm:$0xff]
      %v488 = vld [vmem:[%s2 + $0x10] sm:$0xff]
      %v489 = vld [vmem:[%s2 + $0x18] sm:$0xff]
      %v490 = vpack.c.bf16 %v484, %v483
      %v491 = vpack.c.bf16 %v487, %v486
      %v492 = vpack.c.bf16 %v489, %v488
      %v493 = vld [vmem:[%s3] sm:$0x1]
      %v495 = vlaneseq
      %v496 = vshrl.u32 %v495, 7
      %v497 = vsub.s32 0, %v496
      %v498 = vrot.slane %v493, %v497
      %vm500 = vcmask 261120
      %v502 = vsel %vm500, %v490, 0
      %504 = vmatprep.subr.bf16.mxu0 0
      %505 = vmatpush1.bf16.msra.mxu0 0
      %506 = vmatprep.subr.bf16.mxu0 0
      %507 = vmatpush1.bf16.msra.mxu0 0
      %508 = vmatprep.subr.bf16.mxu0 0
      %509 = vmatpush1.bf16.msra.mxu0 0
      %510 = vmatprep.subr.bf16.mxu0 0
      %511 = vmatpush1.bf16.msra.mxu0 0
      %512 = vmatprep.subr.bf16.mxu0 0
      %513 = vmatpush1.bf16.msra.mxu0 0
      %514 = vmatprep.subr.bf16.mxu0 0
      %515 = vmatpush1.bf16.msra.mxu0 0
      %516 = vmatprep.subr.bf16.mxu0 0
      %517 = vmatpush1.bf16.msra.mxu0 %v492
      %518 = vmatprep.subr.bf16.mxu0 0
      %519 = vmatpush1.bf16.msra.mxu0 %v491
      %520 = vmatprep.subr.bf16.mxu0 0
      %521 = vmatpush2.bf16.msra.mxu0 0
      %522 = vmatprep.subr.bf16.mxu0 0
      %523 = vmatpush2.bf16.msra.mxu0 0
      %524 = vmatprep.subr.bf16.mxu0 0
      %525 = vmatpush2.bf16.msra.mxu0 0
      %526 = vmatprep.subr.bf16.mxu0 0
      %527 = vmatpush2.bf16.msra.mxu0 0
      %528 = vmatprep.subr.bf16.mxu0 0
      %529 = vmatpush2.bf16.msra.mxu0 0
      %530 = vmatprep.subr.bf16.mxu0 0
      %531 = vmatpush2.bf16.msra.mxu0 0
      %532 = vmatprep.subr.bf16.mxu0 0
      %533 = vmatpush2.bf16.msra.mxu0 0
      %534 = vmatprep.subr.bf16.mxu0 0
      %535 = vmatpush2.bf16.msra.mxu0 0
      %536 = vmatprep.mubr.bf16.mxu0 0
      %537 = vmatmul.mubr.bf16.gmra.mxu0 %v502
      %v538 = vpop.f32.mrf.mxu0
      %v539 = vadd.f32 %v498, %v538
      %v540 = vpop.f32.mrf.mxu0
      %v541 = vpop.f32.mrf.mxu0
      %v542 = vadd.f32 %v498, %v541
      %v543 = vpop.f32.mrf.mxu0
      %544 = vdwg.mxu0
      %v545 = vpack.c.bf16 %v542, %v539
      %547 = vrot.lane.b32.xlu0 %v545, 96
      %v548 = vpop.permute.xlu0 %547
      %vm549 = vcmask 130048
      %v551 = vsel %vm549, %v545, 0
      %v554 = vsel %vm549, %v548, 0
      %556 = vmatprep.subr.bf16.mxu0 0
      %557 = vmatpush1.bf16.xpose.msra.mxu0 0
      %558 = vmatprep.subr.bf16.mxu0 0
      %559 = vmatpush1.bf16.xpose.msra.mxu0 0
      %560 = vmatprep.subr.bf16.mxu0 0
      %561 = vmatpush1.bf16.xpose.msra.mxu0 0
      %562 = vmatprep.subr.bf16.mxu0 0
      %563 = vmatpush1.bf16.xpose.msra.mxu0 0
      %564 = vmatprep.subr.bf16.mxu0 0
      %565 = vmatpush1.bf16.xpose.msra.mxu0 0
      %566 = vmatprep.subr.bf16.mxu0 0
      %567 = vmatpush1.bf16.xpose.msra.mxu0 0
      %568 = vmatprep.subr.bf16.mxu0 0
      %569 = vmatpush1.bf16.xpose.msra.mxu0 0
      %570 = vmatprep.subr.bf16.mxu0 0
      %571 = vmatpush1.bf16.xpose.msra.mxu0 %v554
      %572 = vmatprep.subr.bf16.mxu0 0
      %573 = vmatpush2.bf16.xpose.msra.mxu0 0
      %574 = vmatprep.subr.bf16.mxu0 0
      %575 = vmatpush2.bf16.xpose.msra.mxu0 0
      %576 = vmatprep.subr.bf16.mxu0 0
      %577 = vmatpush2.bf16.xpose.msra.mxu0 0
      %578 = vmatprep.subr.bf16.mxu0 0
      %579 = vmatpush2.bf16.xpose.msra.mxu0 0
      %580 = vmatprep.subr.bf16.mxu0 0
      %581 = vmatpush2.bf16.xpose.msra.mxu0 0
      %582 = vmatprep.subr.bf16.mxu0 0
      %583 = vmatpush2.bf16.xpose.msra.mxu0 0
      %584 = vmatprep.subr.bf16.mxu0 0
      %585 = vmatpush2.bf16.xpose.msra.mxu0 0
      %586 = vmatprep.subr.bf16.mxu0 0
      %587 = vmatpush2.bf16.xpose.msra.mxu0 0
      %588 = vmatprep.mubr.bf16.mxu0 0
      %589 = vmatmul.mubr.bf16.gmra.mxu0 %v551
      %v590 = vpop.f32.mrf.mxu0
      %v591 = vadd.f32 0.0, %v590
      %v592 = vpop.f32.mrf.mxu0
      %v593 = vpop.f32.mrf.mxu0
      %v594 = vadd.f32 0.0, %v593
      %v595 = vpop.f32.mrf.mxu0
      %596 = vdwg.mxu0
      %v597 = vmul.f32 %v591, 0.25
      %v598 = vmul.f32 %v594, 0.25
      %v600 = vlaneseq
      %v601 = vshrl.u32 %v600, 7
      %v602 = vsub.s32 0, %v601
      %v603 = vrot.slane %v485, %v602
      %v605 = vadd.f32 %v597, %v603
      %v606 = vadd.f32 %v598, %v603
      %vm607 = vcmask 97280
      %v608 = vsel %vm607, %v605, -inf
      %609 = vmax.xlane.f32.xlu0 %v608
      %v610 = vpop.xlane.xlu0 %609
      %vm611 = vcmask 93184
      %v612 = vsel %vm611, %v606, -inf
      %613 = vmax.xlane.f32.xlu0 %v612
      %v614 = vpop.xlane.xlu0 %613
      %v615 = vsub.f32 %v605, %v610
      %v616 = vsub.f32 %v606, %v614
      %v617 = vmul.f32 %v615, 1.442695
      %v618 = vpow.pop %v617
      %v619 = vmul.f32 %v616, 1.442695
      %v620 = vpow.pop %v619
      %v621 = vsel %vm607, %v618, 0.0
      %622 = vadd.xlane.f32.xlu0 %v621
      %v623 = vpop.xlane.xlu0 %622
      %v624 = vsel %vm611, %v620, 0.0
      %625 = vadd.xlane.f32.xlu0 %v624
      %v626 = vpop.xlane.xlu0 %625
      %v627 = vrcp.pop %v623
      %v628 = vrcp.pop %v626
      %v629 = vmul.f32 %v618, %v627
      %v630 = vmul.f32 %v620, %v628
      %v631 = vpack.c.bf16 %v630, %v629
      %632 = vrot.lane.b32.xlu0 %v545, 64
      %v633 = vpop.permute.xlu0 %632
      %v635 = vsel %vm607, %v631, 0
      %vm637 = vcmask 1045504
      %v639 = vsel %vm637, %v633, 0
      %641 = vmatprep.subr.bf16.mxu0 0
      %642 = vmatpush1.bf16.msra.mxu0 0
      %643 = vmatprep.subr.bf16.mxu0 0
      %644 = vmatpush1.bf16.msra.mxu0 0
      %645 = vmatprep.subr.bf16.mxu0 0
      %646 = vmatpush1.bf16.msra.mxu0 0
      %647 = vmatprep.subr.bf16.mxu0 0
      %648 = vmatpush1.bf16.msra.mxu0 0
      %649 = vmatprep.subr.bf16.mxu0 0
      %650 = vmatpush1.bf16.msra.mxu0 0
      %651 = vmatprep.subr.bf16.mxu0 0
      %652 = vmatpush1.bf16.msra.mxu0 0
      %653 = vmatprep.subr.bf16.mxu0 0
      %654 = vmatpush1.bf16.msra.mxu0 0
      %655 = vmatprep.subr.bf16.mxu0 0
      %656 = vmatpush1.bf16.msra.mxu0 %v639
      %657 = vmatprep.subr.bf16.mxu0 0
      %658 = vmatpush2.bf16.msra.mxu0 0
      %659 = vmatprep.subr.bf16.mxu0 0
      %660 = vmatpush2.bf16.msra.mxu0 0
      %661 = vmatprep.subr.bf16.mxu0 0
      %662 = vmatpush2.bf16.msra.mxu0 0
      %663 = vmatprep.subr.bf16.mxu0 0
      %664 = vmatpush2.bf16.msra.mxu0 0
      %665 = vmatprep.subr.bf16.mxu0 0
      %666 = vmatpush2.bf16.msra.mxu0 0
      %667 = vmatprep.subr.bf16.mxu0 0
      %668 = vmatpush2.bf16.msra.mxu0 0
      %669 = vmatprep.subr.bf16.mxu0 0
      %670 = vmatpush2.bf16.msra.mxu0 0
      %671 = vmatprep.subr.bf16.mxu0 0
      %672 = vmatpush2.bf16.msra.mxu0 0
      %673 = vmatprep.mubr.bf16.mxu0 0
      %674 = vmatmul.mubr.bf16.gmra.mxu0 %v635
      %v675 = vpop.f32.mrf.mxu0
      %v676 = vadd.f32 0.0, %v675
      %v677 = vpop.f32.mrf.mxu0
      %v678 = vpop.f32.mrf.mxu0
      %v679 = vadd.f32 0.0, %v678
      %v680 = vpop.f32.mrf.mxu0
      %681 = vdwg.mxu0
      %682 = vrot.lane.b32.xlu0 %v545, 112
      %v683 = vpop.permute.xlu0 %682
      %684 = vrot.lane.b32.xlu0 %v545, 80
      %v685 = vpop.permute.xlu0 %684
      %v687 = vsel %vm549, %v683, 0
      %v690 = vsel %vm549, %v685, 0
      %692 = vmatprep.subr.bf16.mxu0 0
      %693 = vmatpush1.bf16.xpose.msra.mxu0 0
      %694 = vmatprep.subr.bf16.mxu0 0
      %695 = vmatpush1.bf16.xpose.msra.mxu0 0
      %696 = vmatprep.subr.bf16.mxu0 0
      %697 = vmatpush1.bf16.xpose.msra.mxu0 0
      %698 = vmatprep.subr.bf16.mxu0 0
      %699 = vmatpush1.bf16.xpose.msra.mxu0 0
      %700 = vmatprep.subr.bf16.mxu0 0
      %701 = vmatpush1.bf16.xpose.msra.mxu0 0
      %702 = vmatprep.subr.bf16.mxu0 0
      %703 = vmatpush1.bf16.xpose.msra.mxu0 0
      %704 = vmatprep.subr.bf16.mxu0 0
      %705 = vmatpush1.bf16.xpose.msra.mxu0 0
      %706 = vmatprep.subr.bf16.mxu0 0
      %707 = vmatpush1.bf16.xpose.msra.mxu0 %v690
      %708 = vmatprep.subr.bf16.mxu0 0
      %709 = vmatpush2.bf16.xpose.msra.mxu0 0
      %710 = vmatprep.subr.bf16.mxu0 0
      %711 = vmatpush2.bf16.xpose.msra.mxu0 0
      %712 = vmatprep.subr.bf16.mxu0 0
      %713 = vmatpush2.bf16.xpose.msra.mxu0 0
      %714 = vmatprep.subr.bf16.mxu0 0
      %715 = vmatpush2.bf16.xpose.msra.mxu0 0
      %716 = vmatprep.subr.bf16.mxu0 0
      %717 = vmatpush2.bf16.xpose.msra.mxu0 0
      %718 = vmatprep.subr.bf16.mxu0 0
      %719 = vmatpush2.bf16.xpose.msra.mxu0 0
      %720 = vmatprep.subr.bf16.mxu0 0
      %721 = vmatpush2.bf16.xpose.msra.mxu0 0
      %722 = vmatprep.subr.bf16.mxu0 0
      %723 = vmatpush2.bf16.xpose.msra.mxu0 0
      %724 = vmatprep.mubr.bf16.mxu0 0
      %725 = vmatmul.mubr.bf16.gmra.mxu0 %v687
      %v726 = vpop.f32.mrf.mxu0
      %v727 = vadd.f32 0.0, %v726
      %v728 = vpop.f32.mrf.mxu0
      %v729 = vpop.f32.mrf.mxu0
      %v730 = vadd.f32 0.0, %v729
      %v731 = vpop.f32.mrf.mxu0
      %732 = vdwg.mxu0
      %v733 = vmul.f32 %v727, 0.25
      %v734 = vmul.f32 %v730, 0.25
      %v735 = vadd.f32 %v733, %v603
      %v736 = vadd.f32 %v734, %v603
      %v737 = vsel %vm607, %v735, -inf
      %738 = vmax.xlane.f32.xlu0 %v737
      %v739 = vpop.xlane.xlu0 %738
      %v740 = vsel %vm611, %v736, -inf
      %741 = vmax.xlane.f32.xlu0 %v740
      %v742 = vpop.xlane.xlu0 %741
      %v743 = vsub.f32 %v735, %v739
      %v744 = vsub.f32 %v736, %v742
      %v745 = vmul.f32 %v743, 1.442695
      %v746 = vpow.pop %v745
      %v747 = vmul.f32 %v744, 1.442695
      %v748 = vpow.pop %v747
      %v749 = vsel %vm607, %v746, 0.0
      %750 = vadd.xlane.f32.xlu0 %v749
      %v751 = vpop.xlane.xlu0 %750
      %v752 = vsel %vm611, %v748, 0.0
      %753 = vadd.xlane.f32.xlu0 %v752
      %v754 = vpop.xlane.xlu0 %753
      %v755 = vrcp.pop %v751
      %v756 = vrcp.pop %v754
      %v757 = vmul.f32 %v746, %v755
      %v758 = vmul.f32 %v748, %v756
      %v759 = vpack.c.bf16 %v758, %v757
      %760 = vrot.lane.b32.xlu0 %v545, 48
      %v761 = vpop.permute.xlu0 %760
      %v763 = vsel %vm607, %v759, 0
      %v766 = vsel %vm637, %v761, 0
      %768 = vmatprep.subr.bf16.mxu0 0
      %769 = vmatpush1.bf16.msra.mxu0 0
      %770 = vmatprep.subr.bf16.mxu0 0
      %771 = vmatpush1.bf16.msra.mxu0 0
      %772 = vmatprep.subr.bf16.mxu0 0
      %773 = vmatpush1.bf16.msra.mxu0 0
      %774 = vmatprep.subr.bf16.mxu0 0
      %775 = vmatpush1.bf16.msra.mxu0 0
      %776 = vmatprep.subr.bf16.mxu0 0
      %777 = vmatpush1.bf16.msra.mxu0 0
      %778 = vmatprep.subr.bf16.mxu0 0
      %779 = vmatpush1.bf16.msra.mxu0 0
      %780 = vmatprep.subr.bf16.mxu0 0
      %781 = vmatpush1.bf16.msra.mxu0 0
      %782 = vmatprep.subr.bf16.mxu0 0
      %783 = vmatpush1.bf16.msra.mxu0 %v766
      %784 = vmatprep.subr.bf16.mxu0 0
      %785 = vmatpush2.bf16.msra.mxu0 0
      %786 = vmatprep.subr.bf16.mxu0 0
      %787 = vmatpush2.bf16.msra.mxu0 0
      %788 = vmatprep.subr.bf16.mxu0 0
      %789 = vmatpush2.bf16.msra.mxu0 0
      %790 = vmatprep.subr.bf16.mxu0 0
      %791 = vmatpush2.bf16.msra.mxu0 0
      %792 = vmatprep.subr.bf16.mxu0 0
      %793 = vmatpush2.bf16.msra.mxu0 0
      %794 = vmatprep.subr.bf16.mxu0 0
      %795 = vmatpush2.bf16.msra.mxu0 0
      %796 = vmatprep.subr.bf16.mxu0 0
      %797 = vmatpush2.bf16.msra.mxu0 0
      %798 = vmatprep.subr.bf16.mxu0 0
      %799 = vmatpush2.bf16.msra.mxu0 0
      %800 = vmatprep.mubr.bf16.mxu0 0
      %801 = vmatmul.mubr.bf16.gmra.mxu0 %v763
      %v802 = vpop.f32.mrf.mxu0
      %v803 = vadd.f32 0.0, %v802
      %v804 = vpop.f32.mrf.mxu0
      %v805 = vpop.f32.mrf.mxu0
      %v806 = vadd.f32 0.0, %v805
      %v807 = vpop.f32.mrf.mxu0
      %808 = vdwg.mxu0
      %811 = vrot.lane.b32.xlu0 %v803, 16
      %v812 = vpop.permute.xlu0 %811
      %813 = vrot.lane.b32.xlu0 %v806, 16
      %v814 = vpop.permute.xlu0 %813
      %v817 = vsel %vm549, %v676, %v812
      %v818 = vsel %vm549, %v679, %v814
      %v819 = vld [vmem:[%s4] sm:$0xff]
      %v820 = vld [vmem:[%s4 + $0x8] sm:$0xff]
      %v821 = vld [vmem:[%s4 + $0x10] sm:$0xff]
      %v822 = vld [vmem:[%s4 + $0x18] sm:$0xff]
      %v823 = vpack.c.bf16 %v818, %v817
      %v824 = vpack.c.bf16 %v820, %v819
      %v825 = vpack.c.bf16 %v822, %v821
      %v826 = vld [vmem:[%s5] sm:$0x1]
      %v828 = vlaneseq
      %v829 = vshrl.u32 %v828, 7
      %v830 = vsub.s32 0, %v829
      %v831 = vrot.slane %v826, %v830
      %v834 = vsel %vm500, %v823, 0
      %836 = vmatprep.subr.bf16.mxu0 0
      %837 = vmatpush1.bf16.msra.mxu0 0
      %838 = vmatprep.subr.bf16.mxu0 0
      %839 = vmatpush1.bf16.msra.mxu0 0
      %840 = vmatprep.subr.bf16.mxu0 0
      %841 = vmatpush1.bf16.msra.mxu0 0
      %842 = vmatprep.subr.bf16.mxu0 0
      %843 = vmatpush1.bf16.msra.mxu0 0
      %844 = vmatprep.subr.bf16.mxu0 0
      %845 = vmatpush1.bf16.msra.mxu0 0
      %846 = vmatprep.subr.bf16.mxu0 0
      %847 = vmatpush1.bf16.msra.mxu0 0
      %848 = vmatprep.subr.bf16.mxu0 0
      %849 = vmatpush1.bf16.msra.mxu0 %v825
      %850 = vmatprep.subr.bf16.mxu0 0
      %851 = vmatpush1.bf16.msra.mxu0 %v824
      %852 = vmatprep.subr.bf16.mxu0 0
      %853 = vmatpush2.bf16.msra.mxu0 0
      %854 = vmatprep.subr.bf16.mxu0 0
      %855 = vmatpush2.bf16.msra.mxu0 0
      %856 = vmatprep.subr.bf16.mxu0 0
      %857 = vmatpush2.bf16.msra.mxu0 0
      %858 = vmatprep.subr.bf16.mxu0 0
      %859 = vmatpush2.bf16.msra.mxu0 0
      %860 = vmatprep.subr.bf16.mxu0 0
      %861 = vmatpush2.bf16.msra.mxu0 0
      %862 = vmatprep.subr.bf16.mxu0 0
      %863 = vmatpush2.bf16.msra.mxu0 0
      %864 = vmatprep.subr.bf16.mxu0 0
      %865 = vmatpush2.bf16.msra.mxu0 0
      %866 = vmatprep.subr.bf16.mxu0 0
      %867 = vmatpush2.bf16.msra.mxu0 0
      %868 = vmatprep.mubr.bf16.mxu0 0
      %869 = vmatmul.mubr.bf16.gmra.mxu0 %v834
      %v870 = vpop.f32.mrf.mxu0
      %v871 = vadd.f32 %v831, %v870
      %v872 = vpop.f32.mrf.mxu0
      %v873 = vpop.f32.mrf.mxu0
      %v874 = vadd.f32 %v831, %v873
      %v875 = vpop.f32.mrf.mxu0
      %876 = vdwg.mxu0
      %v877 = vadd.f32 %v483, %v871
      %v878 = vadd.f32 %v484, %v874
      %v879 = vld [vmem:[%s6] sm:$0x1]
      %v880 = vld [vmem:[%s7] sm:$0x1]
      %v881 = vsel %vm500, %v877, 0.0
      %882 = vadd.xlane.f32.xlu0 %v881
      %v883 = vpop.xlane.xlu0 %882
      %vm884 = vcmask 257024
      %v885 = vsel %vm884, %v878, 0.0
      %886 = vadd.xlane.f32.xlu0 %v885
      %v887 = vpop.xlane.xlu0 %886
      %v888 = vrcp.pop 32.0
      %v889 = vmul.f32 %v883, %v888
      %v890 = vmul.f32 %v887, %v888
      %v891 = vsub.f32 %v877, %v889
      %v892 = vsub.f32 %v878, %v890
      %v893 = vmul.f32 %v891, %v891
      %v894 = vmul.f32 %v892, %v892
      %v895 = vsel %vm500, %v893, 0.0
      %896 = vadd.xlane.f32.xlu0 %v895
      %v897 = vpop.xlane.xlu0 %896
      %v898 = vsel %vm884, %v894, 0.0
      %899 = vadd.xlane.f32.xlu0 %v898
      %v900 = vpop.xlane.xlu0 %899
      %v901 = vmul.f32 %v897, %v888
      %v902 = vmul.f32 %v900, %v888
      %v903 = vadd.f32 %v901, 1e-05
      %v904 = vadd.f32 %v902, 1e-05
      %v905 = vrsqrt.pop %v903
      %v906 = vrsqrt.pop %v904
      %v907 = vmul.f32 %v891, %v905
      %v908 = vmul.f32 %v892, %v906
      %v910 = vlaneseq
      %v911 = vshrl.u32 %v910, 7
      %v912 = vsub.s32 0, %v911
      %v913 = vrot.slane %v879, %v912
      %v915 = vmul.f32 %v907, %v913
      %v916 = vmul.f32 %v908, %v913
      %v918 = vlaneseq
      %v919 = vshrl.u32 %v918, 7
      %v920 = vsub.s32 0, %v919
      %v921 = vrot.slane %v880, %v920
      %v923 = vadd.f32 %v915, %v921
      %v924 = vadd.f32 %v916, %v921
      %v925 = vld [vmem:[%s8] sm:$0xff]
      %v926 = vld [vmem:[%s8 + $0x8] sm:$0xff]
      %v927 = vld [vmem:[%s8 + $0x10] sm:$0xff]
      %v928 = vld [vmem:[%s8 + $0x18] sm:$0xff]
      %v929 = vpack.c.bf16 %v924, %v923
      %v930 = vpack.c.bf16 %v926, %v925
      %v931 = vpack.c.bf16 %v928, %v927
      %v932 = vld [vmem:[%s9] sm:$0x1]
      %v934 = vlaneseq
      %v935 = vshrl.u32 %v934, 7
      %v936 = vsub.s32 0, %v935
      %v937 = vrot.slane %v932, %v936
      %v940 = vsel %vm500, %v929, 0
      %942 = vmatprep.subr.bf16.mxu0 0
      %943 = vmatpush1.bf16.msra.mxu0 0
      %944 = vmatprep.subr.bf16.mxu0 0
      %945 = vmatpush1.bf16.msra.mxu0 0
      %946 = vmatprep.subr.bf16.mxu0 0
      %947 = vmatpush1.bf16.msra.mxu0 0
      %948 = vmatprep.subr.bf16.mxu0 0
      %949 = vmatpush1.bf16.msra.mxu0 0
      %950 = vmatprep.subr.bf16.mxu0 0
      %951 = vmatpush1.bf16.msra.mxu0 0
      %952 = vmatprep.subr.bf16.mxu0 0
      %953 = vmatpush1.bf16.msra.mxu0 0
      %954 = vmatprep.subr.bf16.mxu0 0
      %955 = vmatpush1.bf16.msra.mxu0 %v931
      %956 = vmatprep.subr.bf16.mxu0 0
      %957 = vmatpush1.bf16.msra.mxu0 %v930
      %958 = vmatprep.subr.bf16.mxu0 0
      %959 = vmatpush2.bf16.msra.mxu0 0
      %960 = vmatprep.subr.bf16.mxu0 0
      %961 = vmatpush2.bf16.msra.mxu0 0
      %962 = vmatprep.subr.bf16.mxu0 0
      %963 = vmatpush2.bf16.msra.mxu0 0
      %964 = vmatprep.subr.bf16.mxu0 0
      %965 = vmatpush2.bf16.msra.mxu0 0
      %966 = vmatprep.subr.bf16.mxu0 0
      %967 = vmatpush2.bf16.msra.mxu0 0
      %968 = vmatprep.subr.bf16.mxu0 0
      %969 = vmatpush2.bf16.msra.mxu0 0
      %970 = vmatprep.subr.bf16.mxu0 0
      %971 = vmatpush2.bf16.msra.mxu0 0
      %972 = vmatprep.subr.bf16.mxu0 0
      %973 = vmatpush2.bf16.msra.mxu0 0
      %974 = vmatprep.mubr.bf16.mxu0 0
      %975 = vmatmul.mubr.bf16.gmra.mxu0 %v940
      %v976 = vpop.f32.mrf.mxu0
      %v977 = vadd.f32 %v937, %v976
      %v978 = vpop.f32.mrf.mxu0
      %v979 = vpop.f32.mrf.mxu0
      %v980 = vadd.f32 %v937, %v979
      %v981 = vpop.f32.mrf.mxu0
      %982 = vdwg.mxu0
      %v983 = vmul.f32 %v977, %v977
      %v984 = vmul.f32 %v980, %v980
      %v985 = vmul.f32 %v977, %v983
      %v986 = vmul.f32 %v980, %v984
      %v987 = vmul.f32 %v985, 0.044715
      %v988 = vmul.f32 %v986, 0.044715
      %v989 = vadd.f32 %v977, %v987
      %v990 = vadd.f32 %v980, %v988
      %v991 = vmul.f32 %v989, 0.7978846
      %v992 = vmul.f32 %v990, 0.7978846
      %v993 = vtanh.pop %v991
      %v994 = vtanh.pop %v992
      %v995 = vadd.f32 %v993, 1.0
      %v996 = vadd.f32 %v994, 1.0
      %v997 = vmul.f32 %v995, 0.5
      %v998 = vmul.f32 %v996, 0.5
      %v999 = vmul.f32 %v977, %v997
      %v1000 = vmul.f32 %v980, %v998
      %v1001 = vld [vmem:[%s10] sm:$0xff]
      %v1002 = vld [vmem:[%s10 + $0x8] sm:$0xff]
      %v1003 = vld [vmem:[%s10 + $0x10] sm:$0xff]
      %v1004 = vld [vmem:[%s10 + $0x18] sm:$0xff]
      %v1005 = vld [vmem:[%s10 + $0x20] sm:$0xff]
      %v1006 = vld [vmem:[%s10 + $0x28] sm:$0xff]
      %v1007 = vld [vmem:[%s10 + $0x30] sm:$0xff]
      %v1008 = vld [vmem:[%s10 + $0x38] sm:$0xff]
      %v1009 = vpack.c.bf16 %v1000, %v999
      %v1010 = vpack.c.bf16 %v1002, %v1001
      %v1011 = vpack.c.bf16 %v1004, %v1003
      %v1012 = vpack.c.bf16 %v1006, %v1005
      %v1013 = vpack.c.bf16 %v1008, %v1007
      %v1014 = vld [vmem:[%s11] sm:$0x1]
      %v1016 = vlaneseq
      %v1017 = vshrl.u32 %v1016, 7
      %v1018 = vsub.s32 0, %v1017
      %v1019 = vrot.slane %v1014, %v1018
      %vm1021 = vcmask 523264
      %v1023 = vsel %vm1021, %v1009, 0
      %1025 = vmatprep.subr.bf16.mxu0 0
      %1026 = vmatpush1.bf16.msra.mxu0 0
      %1027 = vmatprep.subr.bf16.mxu0 0
      %1028 = vmatpush1.bf16.msra.mxu0 0
      %1029 = vmatprep.subr.bf16.mxu0 0
      %1030 = vmatpush1.bf16.msra.mxu0 0
      %1031 = vmatprep.subr.bf16.mxu0 0
      %1032 = vmatpush1.bf16.msra.mxu0 0
      %1033 = vmatprep.subr.bf16.mxu0 0
      %1034 = vmatpush1.bf16.msra.mxu0 %v1013
      %1035 = vmatprep.subr.bf16.mxu0 0
      %1036 = vmatpush1.bf16.msra.mxu0 %v1012
      %1037 = vmatprep.subr.bf16.mxu0 0
      %1038 = vmatpush1.bf16.msra.mxu0 %v1011
      %1039 = vmatprep.subr.bf16.mxu0 0
      %1040 = vmatpush1.bf16.msra.mxu0 %v1010
      %1041 = vmatprep.subr.bf16.mxu0 0
      %1042 = vmatpush2.bf16.msra.mxu0 0
      %1043 = vmatprep.subr.bf16.mxu0 0
      %1044 = vmatpush2.bf16.msra.mxu0 0
      %1045 = vmatprep.subr.bf16.mxu0 0
      %1046 = vmatpush2.bf16.msra.mxu0 0
      %1047 = vmatprep.subr.bf16.mxu0 0
      %1048 = vmatpush2.bf16.msra.mxu0 0
      %1049 = vmatprep.subr.bf16.mxu0 0
      %1050 = vmatpush2.bf16.msra.mxu0 0
      %1051 = vmatprep.subr.bf16.mxu0 0
      %1052 = vmatpush2.bf16.msra.mxu0 0
      %1053 = vmatprep.subr.bf16.mxu0 0
      %1054 = vmatpush2.bf16.msra.mxu0 0
      %1055 = vmatprep.subr.bf16.mxu0 0
      %1056 = vmatpush2.bf16.msra.mxu0 0
      %1057 = vmatprep.mubr.bf16.mxu0 0
      %1058 = vmatmul.mubr.bf16.gmra.mxu0 %v1023
      %v1059 = vpop.f32.mrf.mxu0
      %v1060 = vadd.f32 %v1019, %v1059
      %v1061 = vpop.f32.mrf.mxu0
      %v1062 = vpop.f32.mrf.mxu0
      %v1063 = vadd.f32 %v1019, %v1062
      %v1064 = vpop.f32.mrf.mxu0
      %1065 = vdwg.mxu0
      %v1066 = vadd.f32 %v923, %v1060
      %v1067 = vadd.f32 %v924, %v1063
      %v1068 = vld [vmem:[%s12] sm:$0x1]
      %v1069 = vld [vmem:[%s13] sm:$0x1]
      %v1070 = vsel %vm500, %v1066, 0.0
      %1071 = vadd.xlane.f32.xlu0 %v1070
      %v1072 = vpop.xlane.xlu0 %1071
      %v1073 = vsel %vm884, %v1067, 0.0
      %1074 = vadd.xlane.f32.xlu0 %v1073
      %v1075 = vpop.xlane.xlu0 %1074
      %v1076 = vmul.f32 %v1072, %v888
      %v1077 = vmul.f32 %v1075, %v888
      %v1078 = vsub.f32 %v1066, %v1076
      %v1079 = vsub.f32 %v1067, %v1077
      %v1080 = vmul.f32 %v1078, %v1078
      %v1081 = vmul.f32 %v1079, %v1079
      %v1082 = vsel %vm500, %v1080, 0.0
      %1083 = vadd.xlane.f32.xlu0 %v1082
      %v1084 = vpop.xlane.xlu0 %1083
      %v1085 = vsel %vm884, %v1081, 0.0
      %1086 = vadd.xlane.f32.xlu0 %v1085
      %v1087 = vpop.xlane.xlu0 %1086
      %v1088 = vmul.f32 %v1084, %v888
      %v1089 = vmul.f32 %v1087, %v888
      %v1090 = vadd.f32 %v1088, 1e-05
      %v1091 = vadd.f32 %v1089, 1e-05
      %v1092 = vrsqrt.pop %v1090
      %v1093 = vrsqrt.pop %v1091
      %v1094 = vmul.f32 %v1078, %v1092
      %v1095 = vmul.f32 %v1079, %v1093
      %v1097 = vlaneseq
      %v1098 = vshrl.u32 %v1097, 7
      %v1099 = vsub.s32 0, %v1098
      %v1100 = vrot.slane %v1068, %v1099
      %v1102 = vmul.f32 %v1094, %v1100
      %v1103 = vmul.f32 %v1095, %v1100
      %v1105 = vlaneseq
      %v1106 = vshrl.u32 %v1105, 7
      %v1107 = vsub.s32 0, %v1106
      %v1108 = vrot.slane %v1069, %v1107
      %v1110 = vadd.f32 %v1102, %v1108
      %v1111 = vadd.f32 %v1103, %v1108
      %1112 = vst.msk [vmem:[%s481] sm:$0xff] %vm500, %v1110
      %1113 = vst.msk [vmem:[%s481 + $0x8] sm:$0xf] %vm884, %v1111
      %p1114 = scmp.lt.s32.totalorder %s25, 1
      %s1115 = scalar_select %p1114, %s25, 1
      %s1116 = smul.addr %s1115, 2
      %s1117 = smul.addr %s1116, 8
      %s1118 = scalar_lea.vmem %s14, %s1117
      // Predicated region
      $region77: #{prompt_xlmr_forward.5} parent=75 // pred_check
        %p1119 = pneg %p347
      $region78: #{prompt_xlmr_forward.5} parent=75 // pred_check_branch
        %1121 = sbr.rel (%p1119) target = $region80
      $region79: #{prompt_xlmr_forward.5} parent=75 // pred_region
        _
      $region80: #{prompt_xlmr_forward.5} parent=75 // pred_fallthru
        _
    $region76: #{prompt_xlmr_forward.5} parent=5 // pred_fallthru
      _
    %p1122 = scmp.le.s32.totalorder 2, %s20
    // Predicated region
    $region81: #{prompt_xlmr_forward.5} parent=5 // pred_check
      %p1123 = pneg %p1122
    $region82: #{prompt_xlmr_forward.5} parent=5 // pred_check_branch
      %1125 = sbr.rel (%p1123) target = $region84
    $region83: #{prompt_xlmr_forward.5} parent=5 // pred_region
      %s1126 = ssub.s32 %s20, 2
      // Predicated region
      $region85: #{prompt_xlmr_forward.5} parent=83 // pred_check
        %p1127 = pneg %p353
      $region86: #{prompt_xlmr_forward.5} parent=83 // pred_check_branch
        %1129 = sbr.rel (%p1127) target = $region88
      $region87: #{prompt_xlmr_forward.5} parent=83 // pred_region
        %p1130 = scmp.lt.s32.totalorder %s26, 1
        %s1131 = scalar_select %p1130, %s26, 1
        %s1132 = smul.addr %s1131, 2
        %s1133 = smul.addr %s1132, 8
        %s1134 = scalar_lea.vmem %s14, %s1133
      $region88: #{prompt_xlmr_forward.5} parent=83 // pred_fallthru
        _
    $region84: #{prompt_xlmr_forward.5} parent=5 // pred_fallthru
      _
  $region6: #{prompt_xlmr_forward.5} parent=0 // loop_footer
    %s24 = sadd.s32 1, %s20
  $region7: #{prompt_xlmr_forward.5} parent=0 // loop_footer_branch
    %19 = sbr.rel target = $region3
  $region8: #{prompt_xlmr_forward.5} parent=0 // loop_exit
    _

// kernel: prompt_xlmr_forward.7
$region0: #{prompt_xlmr_forward.7}
  #allocation0 [shape = 'u32[]', space=smem, size = 0x4, offset = 0x4, fixed_abs, tag = 'smem constant byte address 0x4 - core index']
  #allocation1 [shape = 'u32[144,128]{1,0:T(1,128)}', space=vmem, size = 0x12000, scoped, tag = 'internal scratch']
  %s0 = inlined_call_operand.vmem [shape: f32[24,32], index: 0, kind: input, shape index: {}]
  %s1 = inlined_call_operand.vmem [shape: f32[32,32], index: 1, kind: input, shape index: {}]
  %s2 = inlined_call_operand.vmem [shape: f32[1,32], index: 2, kind: input, shape index: {}]
  %s3 = inlined_call_operand.vmem [shape: f32[1,32], index: 3, kind: input, shape index: {}]
  %s4 = inlined_call_operand.vmem [shape: f32[1,32], index: 4, kind: input, shape index: {}]
  %s5 = inlined_call_operand.vmem [shape: f32[128,32], index: 5, kind: input, shape index: {}]
  %s6 = inlined_call_operand.vmem [shape: f32[1,128], index: 6, kind: input, shape index: {}]
  %s7 = inlined_call_operand.vmem [shape: s32[24,1], index: 7, kind: input, shape index: {}]
  %s8 = inlined_call_operand.vmem [shape: f32[24,128], index: 8, kind: output, shape index: {0}]
  %s9 = inlined_call_operand.hbm [shape: f32[1,1], index: 9, kind: output, shape index: {1}]
  %10 = xla_tuple %s8, %s9
  %s11 = sld [smem:[#allocation0]]
  $region50: #{prompt_xlmr_forward.7} parent=0
    _
  %s13 = ssub.s32 1, %s11
  %s14 = scalar_select 0, %s13, %s11
  $region1: #{prompt_xlmr_forward.7} parent=0
    #allocation2 [shape = 'u8[512]{0}', space=smem, size = 0x200, scoped, tag = 'output window, operand 1, single buffered']
    #allocation3 [shape = 's32[1]{0}', space=sflag, size = 0x4, scoped, tag = 'scoped memory for prompt_xlmr_forward.7']
    %15 = vsyncpa [#allocation3], 0
    // Predicated region
    $region2: #{prompt_xlmr_forward.7} parent=1 // pred_check
      _
    $region3: #{prompt_xlmr_forward.7} parent=1 // pred_check_branch
      %17 = sbr.rel (0) target = $region5
    $region4: #{prompt_xlmr_forward.7} parent=1 // pred_region
      _
    $region5: #{prompt_xlmr_forward.7} parent=1 // pred_fallthru
      _
    // Predicated region
    $region6: #{prompt_xlmr_forward.7} parent=1 // pred_check
      _
    $region7: #{prompt_xlmr_forward.7} parent=1 // pred_check_branch
      %19 = sbr.rel (0) target = $region9
    $region8: #{prompt_xlmr_forward.7} parent=1 // pred_region
      _
    $region9: #{prompt_xlmr_forward.7} parent=1 // pred_fallthru
      _
    // Predicated region
    $region10: #{prompt_xlmr_forward.7} parent=1 // pred_check
      _
    $region11: #{prompt_xlmr_forward.7} parent=1 // pred_check_branch
      %21 = sbr.rel (0) target = $region13
    $region12: #{prompt_xlmr_forward.7} parent=1 // pred_region
      _
    $region13: #{prompt_xlmr_forward.7} parent=1 // pred_fallthru
      _
    // Predicated region
    $region14: #{prompt_xlmr_forward.7} parent=1 // pred_check
      _
    $region15: #{prompt_xlmr_forward.7} parent=1 // pred_check_branch
      %23 = sbr.rel (0) target = $region17
    $region16: #{prompt_xlmr_forward.7} parent=1 // pred_region
      _
    $region17: #{prompt_xlmr_forward.7} parent=1 // pred_fallthru
      _
    // Predicated region
    $region18: #{prompt_xlmr_forward.7} parent=1 // pred_check
      _
    $region19: #{prompt_xlmr_forward.7} parent=1 // pred_check_branch
      %25 = sbr.rel (0) target = $region21
    $region20: #{prompt_xlmr_forward.7} parent=1 // pred_region
      _
    $region21: #{prompt_xlmr_forward.7} parent=1 // pred_fallthru
      _
    // Predicated region
    $region22: #{prompt_xlmr_forward.7} parent=1 // pred_check
      _
    $region23: #{prompt_xlmr_forward.7} parent=1 // pred_check_branch
      %27 = sbr.rel (0) target = $region25
    $region24: #{prompt_xlmr_forward.7} parent=1 // pred_region
      _
    $region25: #{prompt_xlmr_forward.7} parent=1 // pred_fallthru
      _
    // Predicated region
    $region26: #{prompt_xlmr_forward.7} parent=1 // pred_check
      _
    $region27: #{prompt_xlmr_forward.7} parent=1 // pred_check_branch
      %29 = sbr.rel (0) target = $region29
    $region28: #{prompt_xlmr_forward.7} parent=1 // pred_region
      _
    $region29: #{prompt_xlmr_forward.7} parent=1 // pred_fallthru
      _
    // Predicated region
    $region30: #{prompt_xlmr_forward.7} parent=1 // pred_check
      _
    $region31: #{prompt_xlmr_forward.7} parent=1 // pred_check_branch
      %31 = sbr.rel (0) target = $region33
    $region32: #{prompt_xlmr_forward.7} parent=1 // pred_region
      _
    $region33: #{prompt_xlmr_forward.7} parent=1 // pred_fallthru
      _
    %v33 = vld [vmem:[%s0] sm:$0xff]
    %v34 = vld [vmem:[%s0 + $0x8] sm:$0xff]
    %v35 = vld [vmem:[%s0 + $0x10] sm:$0xff]
    %v36 = vld [vmem:[%s1] sm:$0xff]
    %v37 = vld [vmem:[%s1 + $0x8] sm:$0xff]
    %v38 = vld [vmem:[%s1 + $0x10] sm:$0xff]
    %v39 = vld [vmem:[%s1 + $0x18] sm:$0xff]
    %v40 = vpack.c.bf16 %v34, %v33
    %v41 = vpack.c.bf16 %v35, %v35
    %v42 = vpack.c.bf16 %v37, %v36
    %v43 = vpack.c.bf16 %v39, %v38
    %v44 = vld [vmem:[%s2] sm:$0x1]
    %v46 = vlaneseq
    %v47 = vshrl.u32 %v46, 7
    %v48 = vsub.s32 0, %v47
    %v49 = vrot.slane %v44, %v48
    %vm51 = vcmask 261120
    %v53 = vsel %vm51, %v40, 0
    %v56 = vsel %vm51, %v41, 0
    %58 = vmatprep.subr.bf16.mxu0 0
    %59 = vmatpush1.bf16.msra.mxu0 0
    %60 = vmatprep.subr.bf16.mxu0 0
    %61 = vmatpush1.bf16.msra.mxu0 0
    %62 = vmatprep.subr.bf16.mxu0 0
    %63 = vmatpush1.bf16.msra.mxu0 0
    %64 = vmatprep.subr.bf16.mxu0 0
    %65 = vmatpush1.bf16.msra.mxu0 0
    %66 = vmatprep.subr.bf16.mxu0 0
    %67 = vmatpush1.bf16.msra.mxu0 0
    %68 = vmatprep.subr.bf16.mxu0 0
    %69 = vmatpush1.bf16.msra.mxu0 0
    %70 = vmatprep.subr.bf16.mxu0 0
    %71 = vmatpush1.bf16.msra.mxu0 %v43
    %72 = vmatprep.subr.bf16.mxu0 0
    %73 = vmatpush1.bf16.msra.mxu0 %v42
    %74 = vmatprep.subr.bf16.mxu0 0
    %75 = vmatpush2.bf16.msra.mxu0 0
    %76 = vmatprep.subr.bf16.mxu0 0
    %77 = vmatpush2.bf16.msra.mxu0 0
    %78 = vmatprep.subr.bf16.mxu0 0
    %79 = vmatpush2.bf16.msra.mxu0 0
    %80 = vmatprep.subr.bf16.mxu0 0
    %81 = vmatpush2.bf16.msra.mxu0 0
    %82 = vmatprep.subr.bf16.mxu0 0
    %83 = vmatpush2.bf16.msra.mxu0 0
    %84 = vmatprep.subr.bf16.mxu0 0
    %85 = vmatpush2.bf16.msra.mxu0 0
    %86 = vmatprep.subr.bf16.mxu0 0
    %87 = vmatpush2.bf16.msra.mxu0 0
    %88 = vmatprep.subr.bf16.mxu0 0
    %89 = vmatpush2.bf16.msra.mxu0 0
    %90 = vmatprep.mubr.bf16.mxu0 0
    %91 = vmatmul.mubr.bf16.gmra.mxu0 %v53
    %v92 = vpop.f32.mrf.mxu0
    %v93 = vadd.f32 %v49, %v92
    %v94 = vpop.f32.mrf.mxu0
    %v95 = vpop.f32.mrf.mxu0
    %v96 = vadd.f32 %v49, %v95
    %v97 = vpop.f32.mrf.mxu0
    %98 = vmatprep.mubr.bf16.mxu0 0
    %99 = vmatmul.mubr.bf16.gmra.mxu0 %v56
    %v100 = vpop.f32.mrf.mxu0
    %v101 = vadd.f32 %v49, %v100
    %v102 = vpop.f32.mrf.mxu0
    %v103 = vpop.f32.mrf.mxu0
    %v104 = vpop.f32.mrf.mxu0
    %105 = vdwg.mxu0
    %v106 = vmul.f32 %v93, %v93
    %v107 = vmul.f32 %v96, %v96
    %v108 = vmul.f32 %v101, %v101
    %v109 = vmul.f32 %v93, %v106
    %v110 = vmul.f32 %v96, %v107
    %v111 = vmul.f32 %v101, %v108
    %v112 = vmul.f32 %v109, 0.044715
    %v113 = vmul.f32 %v110, 0.044715
    %v114 = vmul.f32 %v111, 0.044715
    %v115 = vadd.f32 %v93, %v112
    %v116 = vadd.f32 %v96, %v113
    %v117 = vadd.f32 %v101, %v114
    %v118 = vmul.f32 %v115, 0.7978846
    %v119 = vmul.f32 %v116, 0.7978846
    %v120 = vmul.f32 %v117, 0.7978846
    %v121 = vtanh.pop %v118
    %v122 = vtanh.pop %v119
    %v123 = vtanh.pop %v120
    %v124 = vadd.f32 %v121, 1.0
    %v125 = vadd.f32 %v122, 1.0
    %v126 = vadd.f32 %v123, 1.0
    %v127 = vmul.f32 %v124, 0.5
    %v128 = vmul.f32 %v125, 0.5
    %v129 = vmul.f32 %v126, 0.5
    %v130 = vmul.f32 %v93, %v127
    %v131 = vmul.f32 %v96, %v128
    %v132 = vmul.f32 %v101, %v129
    %v133 = vld [vmem:[%s3] sm:$0x1]
    %v134 = vld [vmem:[%s4] sm:$0x1]
    %v135 = vsel %vm51, %v130, 0.0
    %136 = vadd.xlane.f32.xlu0 %v135
    %v137 = vpop.xlane.xlu0 %136
    %v138 = vsel %vm51, %v131, 0.0
    %139 = vadd.xlane.f32.xlu0 %v138
    %v140 = vpop.xlane.xlu0 %139
    %v141 = vsel %vm51, %v132, 0.0
    %142 = vadd.xlane.f32.xlu0 %v141
    %v143 = vpop.xlane.xlu0 %142
    %v144 = vrcp.pop 32.0
    %v145 = vmul.f32 %v137, %v144
    %v146 = vmul.f32 %v140, %v144
    %v147 = vmul.f32 %v143, %v144
    %v148 = vsub.f32 %v130, %v145
    %v149 = vsub.f32 %v131, %v146
    %v150 = vsub.f32 %v132, %v147
    %v151 = vmul.f32 %v148, %v148
    %v152 = vmul.f32 %v149, %v149
    %v153 = vmul.f32 %v150, %v150
    %v154 = vsel %vm51, %v151, 0.0
    %155 = vadd.xlane.f32.xlu0 %v154
    %v156 = vpop.xlane.xlu0 %155
    %v157 = vsel %vm51, %v152, 0.0
    %158 = vadd.xlane.f32.xlu0 %v157
    %v159 = vpop.xlane.xlu0 %158
    %v160 = vsel %vm51, %v153, 0.0
    %161 = vadd.xlane.f32.xlu0 %v160
    %v162 = vpop.xlane.xlu0 %161
    %v163 = vmul.f32 %v156, %v144
    %v164 = vmul.f32 %v159, %v144
    %v165 = vmul.f32 %v162, %v144
    %v166 = vadd.f32 %v163, 1e-05
    %v167 = vadd.f32 %v164, 1e-05
    %v168 = vadd.f32 %v165, 1e-05
    %v169 = vrsqrt.pop %v166
    %v170 = vrsqrt.pop %v167
    %v171 = vrsqrt.pop %v168
    %v172 = vmul.f32 %v148, %v169
    %v173 = vmul.f32 %v149, %v170
    %v174 = vmul.f32 %v150, %v171
    %v176 = vlaneseq
    %v177 = vshrl.u32 %v176, 7
    %v178 = vsub.s32 0, %v177
    %v179 = vrot.slane %v133, %v178
    %v181 = vmul.f32 %v172, %v179
    %v182 = vmul.f32 %v173, %v179
    %v183 = vmul.f32 %v174, %v179
    %v185 = vlaneseq
    %v186 = vshrl.u32 %v185, 7
    %v187 = vsub.s32 0, %v186
    %v188 = vrot.slane %v134, %v187
    %v190 = vadd.f32 %v181, %v188
    %v191 = vadd.f32 %v182, %v188
    %v192 = vadd.f32 %v183, %v188
    %v193 = vld [vmem:[%s5] sm:$0xff]
    %v194 = vld [vmem:[%s5 + $0x8] sm:$0xff]
    %v195 = vld [vmem:[%s5 + $0x10] sm:$0xff]
    %v196 = vld [vmem:[%s5 + $0x18] sm:$0xff]
    %v197 = vld [vmem:[%s5 + $0x20] sm:$0xff]
    %v198 = vld [vmem:[%s5 + $0x28] sm:$0xff]
    %v199 = vld [vmem:[%s5 + $0x30] sm:$0xff]
    %v200 = vld [vmem:[%s5 + $0x38] sm:$0xff]
    %v201 = vld [vmem:[%s5 + $0x40] sm:$0xff]
    %v202 = vld [vmem:[%s5 + $0x48] sm:$0xff]
    %v203 = vld [vmem:[%s5 + $0x50] sm:$0xff]
    %v204 = vld [vmem:[%s5 + $0x58] sm:$0xff]
    %v205 = vld [vmem:[%s5 + $0x60] sm:$0xff]
    %v206 = vld [vmem:[%s5 + $0x68] sm:$0xff]
    %v207 = vld [vmem:[%s5 + $0x70] sm:$0xff]
    %v208 = vld [vmem:[%s5 + $0x78] sm:$0xff]
    %v209 = vpack.c.bf16 %v191, %v190
    %v210 = vpack.c.bf16 %v192, %v192
    %v211 = vpack.c.bf16 %v194, %v193
    %v212 = vpack.c.bf16 %v196, %v195
    %v213 = vpack.c.bf16 %v198, %v197
    %v214 = vpack.c.bf16 %v200, %v199
    %v215 = vpack.c.bf16 %v202, %v201
    %v216 = vpack.c.bf16 %v204, %v203
    %v217 = vpack.c.bf16 %v206, %v205
    %v218 = vpack.c.bf16 %v208, %v207
    %v219 = vld [vmem:[%s6] sm:$0x1]
    %v221 = vlaneseq
    %v222 = vshrl.u32 %v221, 7
    %v223 = vsub.s32 0, %v222
    %v224 = vrot.slane %v219, %v223
    %v227 = vsel %vm51, %v209, 0
    %v230 = vsel %vm51, %v210, 0
    %v233 = vsel %vm51, %v211, 0
    %v236 = vsel %vm51, %v212, 0
    %v239 = vsel %vm51, %v213, 0
    %v242 = vsel %vm51, %v214, 0
    %v245 = vsel %vm51, %v215, 0
    %v248 = vsel %vm51, %v216, 0
    %v251 = vsel %vm51, %v217, 0
    %v254 = vsel %vm51, %v218, 0
    %256 = vmatprep.subr.bf16.mxu0 0
    %257 = vmatpush1.bf16.xpose.msra.mxu0 %v254
    %258 = vmatprep.subr.bf16.mxu0 0
    %259 = vmatpush1.bf16.xpose.msra.mxu0 %v251
    %260 = vmatprep.subr.bf16.mxu0 0
    %261 = vmatpush1.bf16.xpose.msra.mxu0 %v248
    %262 = vmatprep.subr.bf16.mxu0 0
    %263 = vmatpush1.bf16.xpose.msra.mxu0 %v245
    %264 = vmatprep.subr.bf16.mxu0 0
    %265 = vmatpush1.bf16.xpose.msra.mxu0 %v242
    %266 = vmatprep.subr.bf16.mxu0 0
    %267 = vmatpush1.bf16.xpose.msra.mxu0 %v239
    %268 = vmatprep.subr.bf16.mxu0 0
    %269 = vmatpush1.bf16.xpose.msra.mxu0 %v236
    %270 = vmatprep.subr.bf16.mxu0 0
    %271 = vmatpush1.bf16.xpose.msra.mxu0 %v233
    %272 = vmatprep.subr.bf16.mxu0 0
    %273 = vmatpush2.bf16.xpose.msra.mxu0 0
    %274 = vmatprep.subr.bf16.mxu0 0
    %275 = vmatpush2.bf16.xpose.msra.mxu0 0
    %276 = vmatprep.subr.bf16.mxu0 0
    %277 = vmatpush2.bf16.xpose.msra.mxu0 0
    %278 = vmatprep.subr.bf16.mxu0 0
    %279 = vmatpush2.bf16.xpose.msra.mxu0 0
    %280 = vmatprep.subr.bf16.mxu0 0
    %281 = vmatpush2.bf16.xpose.msra.mxu0 0
    %282 = vmatprep.subr.bf16.mxu0 0
    %283 = vmatpush2.bf16.xpose.msra.mxu0 0
    %284 = vmatprep.subr.bf16.mxu0 0
    %285 = vmatpush2.bf16.xpose.msra.mxu0 0
    %286 = vmatprep.subr.bf16.mxu0 0
    %287 = vmatpush2.bf16.xpose.msra.mxu0 0
    %288 = vmatprep.mubr.bf16.mxu0 0
    %289 = vmatmul.mubr.bf16.gmra.mxu0 %v227
    %v290 = vpop.f32.mrf.mxu0
    %v291 = vadd.f32 %v224, %v290
    %v292 = vpop.f32.mrf.mxu0
    %v293 = vpop.f32.mrf.mxu0
    %v294 = vadd.f32 %v224, %v293
    %v295 = vpop.f32.mrf.mxu0
    %296 = vmatprep.mubr.bf16.mxu0 0
    %297 = vmatmul.mubr.bf16.gmra.mxu0 %v230
    %v298 = vpop.f32.mrf.mxu0
    %v299 = vadd.f32 %v224, %v298
    %v300 = vpop.f32.mrf.mxu0
    %v301 = vpop.f32.mrf.mxu0
    %v302 = vpop.f32.mrf.mxu0
    %303 = vdwg.mxu0
    %304 = vst [vmem:[%s8] sm:$0xff] %v291
    %305 = vst [vmem:[%s8 + $0x8] sm:$0xff] %v294
    %306 = vst [vmem:[%s8 + $0x10] sm:$0xff] %v299
    %v307 = vld [vmem:[%s7] sm:$0xff]
    %v308 = vld [vmem:[%s7 + $0x8] sm:$0xff]
    %v309 = vld [vmem:[%s7 + $0x10] sm:$0xff]
    %310 = vmax.xlane.f32.xlu0 %v291
    %v311 = vpop.xlane.xlu0 %310
    %312 = vmax.xlane.f32.xlu0 %v294
    %v313 = vpop.xlane.xlu0 %312
    %314 = vmax.xlane.f32.xlu0 %v299
    %v315 = vpop.xlane.xlu0 %314
    %v316 = vsub.f32 %v291, %v311
    %v317 = vsub.f32 %v294, %v313
    %v318 = vsub.f32 %v299, %v315
    %v319 = vmul.f32 %v316, 1.442695
    %v320 = vpow.pop %v319
    %v321 = vmul.f32 %v317, 1.442695
    %v322 = vpow.pop %v321
    %v323 = vmul.f32 %v318, 1.442695
    %v324 = vpow.pop %v323
    %325 = vadd.xlane.f32.xlu0 %v320
    %v326 = vpop.xlane.xlu0 %325
    %327 = vadd.xlane.f32.xlu0 %v322
    %v328 = vpop.xlane.xlu0 %327
    %329 = vadd.xlane.f32.xlu0 %v324
    %v330 = vpop.xlane.xlu0 %329
    %v331 = vlog2.pop %v326
    %v332 = vmul.f32 %v331, 0.6931472
    %v333 = vlog2.pop %v328
    %v334 = vmul.f32 %v333, 0.6931472
    %v335 = vlog2.pop %v330
    %v336 = vmul.f32 %v335, 0.6931472
    %v337 = vadd.f32 %v332, %v311
    %v338 = vadd.f32 %v334, %v313
    %v339 = vadd.f32 %v336, %v315
    %v340 = vlaneseq
    %v341 = vand.u32 %v340, 127
    %342 = vset.pattern.permute.xlu0 0
    %343 = vperm.xlu0 %342, %v307
    %v344 = vpop.permute.xlu0 %343
    %345 = vset.pattern.permute.xlu0 0
    %346 = vperm.xlu0 %345, %v308
    %v347 = vpop.permute.xlu0 %346
    %348 = vset.pattern.permute.xlu0 0
    %349 = vperm.xlu0 %348, %v309
    %v350 = vpop.permute.xlu0 %349
    %vm351 = vcmp.eq.s32.totalorder %v341, %v344
    %vm352 = vcmp.eq.s32.totalorder %v341, %v347
    %vm353 = vcmp.eq.s32.totalorder %v341, %v350
    %v354 = vsel %vm351, %v291, 0.0
    %v355 = vsel %vm352, %v294, 0.0
    %v356 = vsel %vm353, %v299, 0.0
    %357 = vadd.xlane.f32.xlu0 %v354
    %v358 = vpop.xlane.xlu0 %357
    %359 = vadd.xlane.f32.xlu0 %v355
    %v360 = vpop.xlane.xlu0 %359
    %361 = vadd.xlane.f32.xlu0 %v356
    %v362 = vpop.xlane.xlu0 %361
    %vm363 = vcmp.ne.s32.totalorder %v307, 4294967196
    %vm364 = vcmp.ne.s32.totalorder %v308, 4294967196
    %vm365 = vcmp.ne.s32.totalorder %v309, 4294967196
    %v366 = vsel %vm363, 1, 0
    %v367 = vsel %vm364, 1, 0
    %v368 = vsel %vm365, 1, 0
    %v369 = vcvt.s32.f32 %v366
    %v370 = vcvt.s32.f32 %v367
    %v371 = vcvt.s32.f32 %v368
    %v372 = vsub.f32 %v337, %v358
    %v373 = vsub.f32 %v338, %v360
    %v374 = vsub.f32 %v339, %v362
    %v375 = vmul.f32 %v369, %v372
    %v376 = vmul.f32 %v370, %v373
    %v377 = vmul.f32 %v371, %v374
    %vm378 = vcmask 7168
    %v379 = vsel %vm378, %v375, 0.0
    %v380 = vsel %vm378, %v376, 0.0
    %v381 = vadd.f32 %v379, %v380
    %v382 = vsel %vm378, %v377, 0.0
    %v383 = vadd.f32 %v381, %v382
    %384 = vadd.xlane.f32.xlu0 %v383
    %v385 = vpop.xlane.xlu0 %384
    %v386 = vrot.slane %v385, 4
    %v387 = vadd.f32 %v385, %v386
    %v388 = vrot.slane %v387, 2
    %v389 = vadd.f32 %v387, %v388
    %v390 = vrot.slane %v389, 1
    %v391 = vadd.f32 %v389, %v390
    %s392 = vtos %v391
    %v393 = vsel %vm378, %v369, 0.0
    %v394 = vsel %vm378, %v370, 0.0
    %v395 = vadd.f32 %v393, %v394
    %v396 = vsel %vm378, %v371, 0.0
    %v397 = vadd.f32 %v395, %v396
    %398 = vadd.xlane.f32.xlu0 %v397
    %v399 = vpop.xlane.xlu0 %398
    %v400 = vrot.slane %v399, 4
    %v401 = vadd.f32 %v399, %v400
    %v402 = vrot.slane %v401, 2
    %v403 = vadd.f32 %v401, %v402
    %v404 = vrot.slane %v403, 1
    %v405 = vadd.f32 %v403, %v404
    %s406 = vtos %v405
    %s407 = smax.f32 %s406, 1.0
    %v408 = vstv %s407
    %v409 = vrcp.pop %v408
    %s410 = vtos %v409
    %s411 = smul.f32 %s392, %s410
    %s412 = scalar_lea.smem [#allocation2], 0
    %413 = sst [smem:[%s412]] %s411
    // Predicated region
    $region34: #{prompt_xlmr_forward.7} parent=1 // pred_check
      _
    $region35: #{prompt_xlmr_forward.7} parent=1 // pred_check_branch
      %415 = sbr.rel (0) target = $region37
    $region36: #{prompt_xlmr_forward.7} parent=1 // pred_region
      _
    $region37: #{prompt_xlmr_forward.7} parent=1 // pred_fallthru
      _
    // Predicated region
    $region38: #{prompt_xlmr_forward.7} parent=1 // pred_check
      _
    $region39: #{prompt_xlmr_forward.7} parent=1 // pred_check_branch
      %417 = sbr.rel (0) target = $region41
    $region40: #{prompt_xlmr_forward.7} parent=1 // pred_region
      %s419 = ssub.s32 16, 16
      %420 = vsyncadd [#allocation3], %s419
      %423 = dma.smem_to_hbm [#allocation2], 16, %s9, [#allocation3]
    $region41: #{prompt_xlmr_forward.7} parent=1 // pred_fallthru
      _
    // Predicated region
    $region42: #{prompt_xlmr_forward.7} parent=1 // pred_check
      _
    $region43: #{prompt_xlmr_forward.7} parent=1 // pred_check_branch
      %425 = sbr.rel (0) target = $region45
    $region44: #{prompt_xlmr_forward.7} parent=1 // pred_region
      _
    $region45: #{prompt_xlmr_forward.7} parent=1 // pred_fallthru
      _
    // Predicated region
    $region46: #{prompt_xlmr_forward.7} parent=1 // pred_check
      _
    $region47: #{prompt_xlmr_forward.7} parent=1 // pred_check_branch
      %427 = sbr.rel (0) target = $region49
    $region48: #{prompt_xlmr_forward.7} parent=1 // pred_region
      %428 = dma.done [#allocation3], 16
    $region49: #{prompt_xlmr_forward.7} parent=1 // pred_fallthru
      _
    %429 = sfence
    %430 = vsyncpa [#allocation3], 1

</llo_original>
